<compile_context>
chip_gen: v7x
topology: tpu7x:2x2x1
jax: 0.10.0
libtpu: 0.0.40
codegen_flags: <defaults>
</compile_context>

<pallas_src>
import functools

import jax
import jax.numpy as jnp
from jax.experimental import pallas as pl
from jax.experimental.pallas import tpu as pltpu

N_H1 = 128
N_H2 = 256
CH_HISTORY = 2
N_I = 3 + CH_HISTORY   # 5
N_O = 4

TB = 512               # batch tile (lane axis); multiple of 128


def fnn_kernel(x_ref, w1_ref, b1_ref, w2_ref, b2_ref, w3_ref, b3_ref, o_ref):
    # Activations are (features, batch): batch on the lane axis -> lane-dense IO.
    # bf16 matmul operands, f32 MXU accumulation, f32 elementwise.
    x = x_ref[...].astype(jnp.bfloat16)                             # (N_I, TB)

    # Layer 1: Linear(N_I, N_H1) + ReLU.
    # (K=5 is tiny for the MXU; a VPU FMA unroll is only worth it if the
    #  vmatmul slot binds — kept on the MXU for simplicity.)
    h1 = jnp.dot(w1_ref[...].astype(jnp.bfloat16), x,
                 preferred_element_type=jnp.float32)                # (N_H1, TB)
    h1 = jnp.maximum(h1 + b1_ref[...], 0.0)

    # Layer 2: Linear(N_H1, N_H2) + ReLU.
    h2 = jnp.dot(w2_ref[...].astype(jnp.bfloat16), h1.astype(jnp.bfloat16),
                 preferred_element_type=jnp.float32)                # (N_H2, TB)
    h2 = jnp.maximum(h2 + b2_ref[...], 0.0)

    # Layer 3: Linear(N_H2, N_O) + Sigmoid.
    z = jnp.dot(w3_ref[...].astype(jnp.bfloat16), h2.astype(jnp.bfloat16),
                preferred_element_type=jnp.float32) + b3_ref[...]   # (N_O, TB)
    o_ref[...] = jax.nn.sigmoid(z).astype(o_ref.dtype)


@functools.partial(jax.jit, static_argnames=("tb",))
def fnn_forward(x, params, *, tb=TB):
    """x: (B, N_I) float32. params: PyTorch-native W (out,in), b (out,1). Returns (B, N_O)."""
    w1, b1 = params["w1"], params["b1"]
    w2, b2 = params["w2"], params["b2"]
    w3, b3 = params["w3"], params["b3"]

    B = x.shape[0]
    n_tiles = pl.cdiv(B, tb)
    b_pad = n_tiles * tb

    # Transpose to (features, batch) and pad batch (lane axis) to a tile multiple.
    xt = jnp.pad(x.T, ((0, 0), (0, b_pad - B)))                     # (N_I, b_pad)

    # Resident (constant index_map) specs for weights/biases.
    resident = lambda shape: pl.BlockSpec(shape, lambda i: (0, 0))

    cost = pl.CostEstimate(
        flops=2 * B * (N_I * N_H1 + N_H1 * N_H2 + N_H2 * N_O),
        transcendentals=B * N_O,
        bytes_accessed=(B * (N_I + N_O) * 4
                        + 4 * (N_I * N_H1 + N_H1 * N_H2 + N_H2 * N_O
                               + N_H1 + N_H2 + N_O)),
    )

    out_t = pl.pallas_call(
        fnn_kernel,
        out_shape=jax.ShapeDtypeStruct((N_O, b_pad), jnp.float32),
        grid=(n_tiles,),
        in_specs=[
            pl.BlockSpec((N_I, tb), lambda i: (0, i)),   # x tile (streamed)
            resident(w1.shape), resident(b1.shape),
            resident(w2.shape), resident(b2.shape),
            resident(w3.shape), resident(b3.shape),
        ],
        out_specs=pl.BlockSpec((N_O, tb), lambda i: (0, i)),
        compiler_params=pltpu.CompilerParams(
            dimension_semantics=("parallel",),
            vmem_limit_bytes=64 * 1024 * 1024,
        ),
        cost_estimate=cost,
    )(xt, w1, b1, w2, b2, w3, b3)

    # Back to PyTorch-style (B, N_O); drop the batch padding.
    return out_t[:, :B].T


def init_params(key):
    """PyTorch nn.Linear default init: uniform +-1/sqrt(fan_in); W is (out,in), b is (out,1)."""
    ks = jax.random.split(key, 6)

    def linear(kw, kb, fan_in, fan_out):
        bound = 1.0 / jnp.sqrt(fan_in)
        w = jax.random.uniform(kw, (fan_out, fan_in), jnp.float32, -bound, bound)
        b = jax.random.uniform(kb, (fan_out, 1), jnp.float32, -bound, bound)
        return w, b

    w1, b1 = linear(ks[0], ks[1], N_I, N_H1)
    w2, b2 = linear(ks[2], ks[3], N_H1, N_H2)
    w3, b3 = linear(ks[4], ks[5], N_H2, N_O)
    return {"w1": w1, "b1": b1, "w2": w2, "b2": b2, "w3": w3, "b3": b3}


def fnn_reference(x, p):
    """Pure-JAX f32 reference (PyTorch-native weight layout)."""
    h1 = jnp.maximum(x @ p["w1"].T + p["b1"].T, 0.0)
    h2 = jnp.maximum(h1 @ p["w2"].T + p["b2"].T, 0.0)
    return jax.nn.sigmoid(h2 @ p["w3"].T + p["b3"].T)


if __name__ == "__main__":
    key = jax.random.PRNGKey(0)
    k_param, k_x = jax.random.split(key)
    params = init_params(k_param)

    batch = 8
    x = jax.random.normal(k_x, (batch, N_I), dtype=jnp.float32)

    out = fnn_forward(x, params)
    out = jax.block_until_ready(out)

    ref = fnn_reference(x, params)
    assert out.shape == (batch, N_O)
    # bf16 matmul operands (f32 accumulate) vs f32 reference: sigmoid output in
    # [0,1], observed error << 1e-2; use a bf16-appropriate tolerance.
    assert jnp.allclose(out, ref, atol=2e-2, rtol=0.0), "mismatch vs JAX reference"

    print("KERNEL_OK")
</pallas_src>

<mosaic_0001>
module attributes {stable_mosaic.version = 11 : i64} {
  func.func @fnn_kernel(%arg0: i32, %arg1: memref<5x512xf32, #tpu.memory_space<vmem>>, %arg2: memref<128x5xf32, #tpu.memory_space<vmem>>, %arg3: memref<128x1xf32, #tpu.memory_space<vmem>>, %arg4: memref<256x128xf32, #tpu.memory_space<vmem>>, %arg5: memref<256x1xf32, #tpu.memory_space<vmem>>, %arg6: memref<4x256xf32, #tpu.memory_space<vmem>>, %arg7: memref<4x1xf32, #tpu.memory_space<vmem>>, %arg8: memref<4x512xf32, #tpu.memory_space<vmem>>) attributes {dimension_semantics = [#tpu.dimension_semantics<parallel>], iteration_bounds = array<i64: 1>, scalar_prefetch = 0 : i64, scratch_operands = 0 : i64, tpu.core_type = #tpu.core_type<tc>, window_params = [{transform_indices = @transform_0, window_bounds = array<i64: 5, 512>}, {pipeline_mode = #tpu.pipeline_mode<synchronous>, transform_indices = @transform_1, window_bounds = array<i64: 128, 5>}, {pipeline_mode = #tpu.pipeline_mode<synchronous>, transform_indices = @transform_2, window_bounds = array<i64: 128, 1>}, {pipeline_mode = #tpu.pipeline_mode<synchronous>, transform_indices = @transform_3, window_bounds = array<i64: 256, 128>}, {pipeline_mode = #tpu.pipeline_mode<synchronous>, transform_indices = @transform_4, window_bounds = array<i64: 256, 1>}, {pipeline_mode = #tpu.pipeline_mode<synchronous>, transform_indices = @transform_5, window_bounds = array<i64: 4, 256>}, {pipeline_mode = #tpu.pipeline_mode<synchronous>, transform_indices = @transform_6, window_bounds = array<i64: 4, 1>}, {transform_indices = @transform_7, window_bounds = array<i64: 4, 512>}]} {
    %c0 = arith.constant 0 : index
    %c0_0 = arith.constant 0 : index
    %0 = vector.load %arg1[%c0, %c0_0] : memref<5x512xf32, #tpu.memory_space<vmem>>, vector<5x512xf32>
    %1 = arith.truncf %0 : vector<5x512xf32> to vector<5x512xbf16>
    %c0_1 = arith.constant 0 : index
    %c0_2 = arith.constant 0 : index
    %2 = vector.load %arg2[%c0_1, %c0_2] : memref<128x5xf32, #tpu.memory_space<vmem>>, vector<128x5xf32>
    %3 = arith.truncf %2 : vector<128x5xf32> to vector<128x5xbf16>
    %cst = arith.constant dense<0.000000e+00> : vector<128x512xf32>
    %4 = tpu.matmul %3, %1, %cst {dimension_numbers = #tpu.dot_dimension_numbers<[1], [0], [0], [1], [0, 0, 1, 1], [], []>} : vector<128x5xbf16>, vector<5x512xbf16>, vector<128x512xf32> -> vector<128x512xf32>
    %c0_3 = arith.constant 0 : index
    %c0_4 = arith.constant 0 : index
    %5 = vector.load %arg3[%c0_3, %c0_4] : memref<128x1xf32, #tpu.memory_space<vmem>>, vector<128x1xf32>
    %6 = vector.broadcast %5 : vector<128x1xf32> to vector<128x512xf32>
    %7 = arith.addf %4, %6 : vector<128x512xf32>
    %cst_5 = arith.constant 0.000000e+00 : f32
    %8 = vector.broadcast %cst_5 : f32 to vector<128x512xf32>
    %9 = arith.maximumf %7, %8 : vector<128x512xf32>
    %c0_6 = arith.constant 0 : index
    %c0_7 = arith.constant 0 : index
    %10 = vector.load %arg4[%c0_6, %c0_7] : memref<256x128xf32, #tpu.memory_space<vmem>>, vector<256x128xf32>
    %11 = arith.truncf %10 : vector<256x128xf32> to vector<256x128xbf16>
    %12 = arith.truncf %9 : vector<128x512xf32> to vector<128x512xbf16>
    %cst_8 = arith.constant dense<0.000000e+00> : vector<256x512xf32>
    %13 = tpu.matmul %11, %12, %cst_8 {dimension_numbers = #tpu.dot_dimension_numbers<[1], [0], [0], [1], [0, 0, 1, 1], [], []>} : vector<256x128xbf16>, vector<128x512xbf16>, vector<256x512xf32> -> vector<256x512xf32>
    %c0_9 = arith.constant 0 : index
    %c0_10 = arith.constant 0 : index
    %14 = vector.load %arg5[%c0_9, %c0_10] : memref<256x1xf32, #tpu.memory_space<vmem>>, vector<256x1xf32>
    %15 = vector.broadcast %14 : vector<256x1xf32> to vector<256x512xf32>
    %16 = arith.addf %13, %15 : vector<256x512xf32>
    %cst_11 = arith.constant 0.000000e+00 : f32
    %17 = vector.broadcast %cst_11 : f32 to vector<256x512xf32>
    %18 = arith.maximumf %16, %17 : vector<256x512xf32>
    %c0_12 = arith.constant 0 : index
    %c0_13 = arith.constant 0 : index
    %19 = vector.load %arg6[%c0_12, %c0_13] : memref<4x256xf32, #tpu.memory_space<vmem>>, vector<4x256xf32>
    %20 = arith.truncf %19 : vector<4x256xf32> to vector<4x256xbf16>
    %21 = arith.truncf %18 : vector<256x512xf32> to vector<256x512xbf16>
    %cst_14 = arith.constant dense<0.000000e+00> : vector<4x512xf32>
    %22 = tpu.matmul %20, %21, %cst_14 {dimension_numbers = #tpu.dot_dimension_numbers<[1], [0], [0], [1], [0, 0, 1, 1], [], []>} : vector<4x256xbf16>, vector<256x512xbf16>, vector<4x512xf32> -> vector<4x512xf32>
    %c0_15 = arith.constant 0 : index
    %c0_16 = arith.constant 0 : index
    %23 = vector.load %arg7[%c0_15, %c0_16] : memref<4x1xf32, #tpu.memory_space<vmem>>, vector<4x1xf32>
    %24 = vector.broadcast %23 : vector<4x1xf32> to vector<4x512xf32>
    %25 = arith.addf %22, %24 : vector<4x512xf32>
    %26 = arith.negf %25 : vector<4x512xf32>
    %27 = math.exp %26 : vector<4x512xf32>
    %cst_17 = arith.constant 1.000000e+00 : f32
    %28 = vector.broadcast %cst_17 : f32 to vector<4x512xf32>
    %29 = arith.addf %28, %27 : vector<4x512xf32>
    %30 = arith.divf %28, %29 : vector<4x512xf32>
    %c0_18 = arith.constant 0 : index
    %c0_19 = arith.constant 0 : index
    %31 = vector.load %arg8[%c0_18, %c0_19] : memref<4x512xf32, #tpu.memory_space<vmem>>, vector<4x512xf32>
    tpu.vector_store %arg8[%c0_18, %c0_19], %30 {strides = array<i32>} : memref<4x512xf32, #tpu.memory_space<vmem>>, vector<4x512xf32>,
    return
  }
  func.func @transform_0(%arg0: i32) -> (i32, i32) {
    %c0_i32 = arith.constant 0 : i32
    %c0_i32_0 = arith.constant 0 : i32
    return %c0_i32, %arg0 : i32, i32
  }
  func.func @transform_1(%arg0: i32) -> (i32, i32) {
    %c0_i32 = arith.constant 0 : i32
    %c0_i32_0 = arith.constant 0 : i32
    %c0_i32_1 = arith.constant 0 : i32
    return %c0_i32, %c0_i32_0 : i32, i32
  }
  func.func @transform_2(%arg0: i32) -> (i32, i32) {
    %c0_i32 = arith.constant 0 : i32
    %c0_i32_0 = arith.constant 0 : i32
    %c0_i32_1 = arith.constant 0 : i32
    return %c0_i32, %c0_i32_0 : i32, i32
  }
  func.func @transform_3(%arg0: i32) -> (i32, i32) {
    %c0_i32 = arith.constant 0 : i32
    %c0_i32_0 = arith.constant 0 : i32
    %c0_i32_1 = arith.constant 0 : i32
    return %c0_i32, %c0_i32_0 : i32, i32
  }
  func.func @transform_4(%arg0: i32) -> (i32, i32) {
    %c0_i32 = arith.constant 0 : i32
    %c0_i32_0 = arith.constant 0 : i32
    %c0_i32_1 = arith.constant 0 : i32
    return %c0_i32, %c0_i32_0 : i32, i32
  }
  func.func @transform_5(%arg0: i32) -> (i32, i32) {
    %c0_i32 = arith.constant 0 : i32
    %c0_i32_0 = arith.constant 0 : i32
    %c0_i32_1 = arith.constant 0 : i32
    return %c0_i32, %c0_i32_0 : i32, i32
  }
  func.func @transform_6(%arg0: i32) -> (i32, i32) {
    %c0_i32 = arith.constant 0 : i32
    %c0_i32_0 = arith.constant 0 : i32
    %c0_i32_1 = arith.constant 0 : i32
    return %c0_i32, %c0_i32_0 : i32, i32
  }
  func.func @transform_7(%arg0: i32) -> (i32, i32) {
    %c0_i32 = arith.constant 0 : i32
    %c0_i32_0 = arith.constant 0 : i32
    return %c0_i32, %arg0 : i32, i32
  }
}

</mosaic_0001>

<llo_original>
// kernel: fnn_forward.1
$region0: #{fnn_forward.1}
  #allocation0 [shape = 'u32[]', space=smem, size = 0x4, offset = 0x4, fixed_abs, tag = 'smem constant byte address 0x4 - core index']
  #allocation1 [shape = 'u32[144,128]{1,0:T(1,128)}', space=vmem, size = 0x12000, scoped, tag = 'internal scratch']
  %s0 = inlined_call_operand.hbm [shape: f32[5,512], index: 0, kind: input, shape index: {}]
  %s1 = inlined_call_operand.hbm [shape: f32[128,5], index: 1, kind: input, shape index: {}]
  %s2 = inlined_call_operand.hbm [shape: f32[128,1], index: 2, kind: input, shape index: {}]
  %s3 = inlined_call_operand.hbm [shape: f32[256,128], index: 3, kind: input, shape index: {}]
  %s4 = inlined_call_operand.hbm [shape: f32[256,1], index: 4, kind: input, shape index: {}]
  %s5 = inlined_call_operand.hbm [shape: f32[4,256], index: 5, kind: input, shape index: {}]
  %s6 = inlined_call_operand.hbm [shape: f32[4,1], index: 6, kind: input, shape index: {}]
  %s7 = inlined_call_operand.hbm [shape: f32[4,512], index: 7, kind: output, shape index: {}]
  %s8 = sld [smem:[#allocation0]]
  $region66: #{fnn_forward.1} parent=0
    _
  %s10 = ssub.s32 1, %s8
  %s11 = scalar_select 0, %s10, %s8
  $region1: #{fnn_forward.1} parent=0
    #allocation2 [shape = 'u8[16384]{0}', space=vmem, size = 0x4000, scoped, tag = 'input window, operand 0, single buffered']
    #allocation3 [shape = 's32[1]{0}', space=sflag, size = 0x4, scoped, tag = 'scoped memory for fnn_forward.1']
    #allocation4 [shape = 's32[1]{0}', space=sflag, size = 0x4, scoped, tag = 'scoped memory for fnn_forward.1']
    #allocation5 [shape = 'u8[65536]{0}', space=vmem, size = 0x10000, scoped, tag = 'input window, operand 1, single buffered']
    #allocation6 [shape = 's32[1]{0}', space=sflag, size = 0x4, scoped, tag = 'scoped memory for fnn_forward.1']
    #allocation7 [shape = 'u8[65536]{0}', space=vmem, size = 0x10000, scoped, tag = 'input window, operand 2, single buffered']
    #allocation8 [shape = 'u8[131072]{0}', space=vmem, size = 0x20000, scoped, tag = 'input window, operand 3, single buffered']
    #allocation9 [shape = 's32[1]{0}', space=sflag, size = 0x4, scoped, tag = 'scoped memory for fnn_forward.1']
    #allocation10 [shape = 'u8[131072]{0}', space=vmem, size = 0x20000, scoped, tag = 'input window, operand 4, single buffered']
    #allocation11 [shape = 'u8[4096]{0}', space=vmem, size = 0x1000, scoped, tag = 'input window, operand 5, single buffered']
    #allocation12 [shape = 's32[1]{0}', space=sflag, size = 0x4, scoped, tag = 'scoped memory for fnn_forward.1']
    #allocation13 [shape = 'u8[2048]{0}', space=vmem, size = 0x800, scoped, tag = 'input window, operand 6, single buffered']
    #allocation14 [shape = 'u8[8192]{0}', space=vmem, size = 0x2000, scoped, tag = 'output window, operand 0, single buffered']
    %12 = vsyncpa [#allocation3], 0
    %13 = vsyncpa [#allocation6], 0
    %14 = vsyncpa [#allocation9], 0
    %15 = vsyncpa [#allocation12], 0
    %16 = vsyncpa [#allocation4], 0
    // Predicated region
    $region2: #{fnn_forward.1} parent=1 // pred_check
      _
    $region3: #{fnn_forward.1} parent=1 // pred_check_branch
      %18 = sbr.rel (0) target = $region5
    $region4: #{fnn_forward.1} parent=1 // pred_region
      %s20 = ssub.s32 512, 512
      %21 = vsyncadd [#allocation3], %s20
      %s23 = sshll.u32 [#allocation2], 4
      %s24 = int_to_ptr.vmem [resolvable:$true] %s23
      %26 = dma.hbm_to_vmem [thread:$0]  %s0, 512, %s24, [#allocation3]
    $region5: #{fnn_forward.1} parent=1 // pred_fallthru
      _
    // Predicated region
    $region6: #{fnn_forward.1} parent=1 // pred_check
      _
    $region7: #{fnn_forward.1} parent=1 // pred_check_branch
      %28 = sbr.rel (0) target = $region9
    $region8: #{fnn_forward.1} parent=1 // pred_region
      %s30 = ssub.s32 2048, 2048
      %31 = vsyncadd [#allocation6], %s30
      %s32 = sshll.u32 [#allocation5], 4
      %s33 = int_to_ptr.vmem [resolvable:$true] %s32
      %38 = dma.hbm_to_vmem [thread:$0]  %s1, 2048, %s33, [#allocation6], 128, 128, 8
    $region9: #{fnn_forward.1} parent=1 // pred_fallthru
      _
    // Predicated region
    $region10: #{fnn_forward.1} parent=1 // pred_check
      _
    $region11: #{fnn_forward.1} parent=1 // pred_check_branch
      %40 = sbr.rel (0) target = $region13
    $region12: #{fnn_forward.1} parent=1 // pred_region
      %s42 = ssub.s32 2048, 2048
      %43 = vsyncadd [#allocation6], %s42
      %s44 = sshll.u32 [#allocation7], 4
      %s45 = int_to_ptr.vmem [resolvable:$true] %s44
      %50 = dma.hbm_to_vmem [thread:$0]  %s2, 2048, %s45, [#allocation6], 128, 128, 8
    $region13: #{fnn_forward.1} parent=1 // pred_fallthru
      _
    // Predicated region
    $region14: #{fnn_forward.1} parent=1 // pred_check
      _
    $region15: #{fnn_forward.1} parent=1 // pred_check_branch
      %52 = sbr.rel (0) target = $region17
    $region16: #{fnn_forward.1} parent=1 // pred_region
      %s54 = ssub.s32 4096, 4096
      %55 = vsyncadd [#allocation9], %s54
      %s56 = sshll.u32 [#allocation8], 4
      %s57 = int_to_ptr.vmem [resolvable:$true] %s56
      %62 = dma.hbm_to_vmem [thread:$0]  %s3, 4096, %s57, [#allocation9], 128, 128, 8
    $region17: #{fnn_forward.1} parent=1 // pred_fallthru
      _
    // Predicated region
    $region18: #{fnn_forward.1} parent=1 // pred_check
      _
    $region19: #{fnn_forward.1} parent=1 // pred_check_branch
      %64 = sbr.rel (0) target = $region21
    $region20: #{fnn_forward.1} parent=1 // pred_region
      %s66 = ssub.s32 4096, 4096
      %67 = vsyncadd [#allocation9], %s66
      %s68 = sshll.u32 [#allocation10], 4
      %s69 = int_to_ptr.vmem [resolvable:$true] %s68
      %74 = dma.hbm_to_vmem [thread:$0]  %s4, 4096, %s69, [#allocation9], 128, 128, 8
    $region21: #{fnn_forward.1} parent=1 // pred_fallthru
      _
    // Predicated region
    $region22: #{fnn_forward.1} parent=1 // pred_check
      _
    $region23: #{fnn_forward.1} parent=1 // pred_check_branch
      %76 = sbr.rel (0) target = $region25
    $region24: #{fnn_forward.1} parent=1 // pred_region
      %s78 = ssub.s32 128, 128
      %79 = vsyncadd [#allocation12], %s78
      %s81 = sshll.u32 [#allocation11], 4
      %s82 = int_to_ptr.vmem [resolvable:$true] %s81
      %84 = dma.hbm_to_vmem [thread:$0]  %s5, 128, %s82, [#allocation12]
    $region25: #{fnn_forward.1} parent=1 // pred_fallthru
      _
    // Predicated region
    $region26: #{fnn_forward.1} parent=1 // pred_check
      _
    $region27: #{fnn_forward.1} parent=1 // pred_check_branch
      %86 = sbr.rel (0) target = $region29
    $region28: #{fnn_forward.1} parent=1 // pred_region
      %s88 = ssub.s32 64, 64
      %89 = vsyncadd [#allocation12], %s88
      %s91 = sshll.u32 [#allocation13], 4
      %s92 = int_to_ptr.vmem [resolvable:$true] %s91
      %94 = dma.hbm_to_vmem [thread:$0]  %s6, 64, %s92, [#allocation12]
    $region29: #{fnn_forward.1} parent=1 // pred_fallthru
      _
    // Predicated region
    $region30: #{fnn_forward.1} parent=1 // pred_check
      _
    $region31: #{fnn_forward.1} parent=1 // pred_check_branch
      %96 = sbr.rel (0) target = $region33
    $region32: #{fnn_forward.1} parent=1 // pred_region
      %97 = dma.done [#allocation3], 512
    $region33: #{fnn_forward.1} parent=1 // pred_fallthru
      _
    // Predicated region
    $region34: #{fnn_forward.1} parent=1 // pred_check
      _
    $region35: #{fnn_forward.1} parent=1 // pred_check_branch
      %99 = sbr.rel (0) target = $region37
    $region36: #{fnn_forward.1} parent=1 // pred_region
      %100 = dma.done [#allocation6], 2048
    $region37: #{fnn_forward.1} parent=1 // pred_fallthru
      _
    // Predicated region
    $region38: #{fnn_forward.1} parent=1 // pred_check
      _
    $region39: #{fnn_forward.1} parent=1 // pred_check_branch
      %102 = sbr.rel (0) target = $region41
    $region40: #{fnn_forward.1} parent=1 // pred_region
      %103 = dma.done [#allocation6], 2048
    $region41: #{fnn_forward.1} parent=1 // pred_fallthru
      _
    // Predicated region
    $region42: #{fnn_forward.1} parent=1 // pred_check
      _
    $region43: #{fnn_forward.1} parent=1 // pred_check_branch
      %105 = sbr.rel (0) target = $region45
    $region44: #{fnn_forward.1} parent=1 // pred_region
      %106 = dma.done [#allocation9], 4096
    $region45: #{fnn_forward.1} parent=1 // pred_fallthru
      _
    // Predicated region
    $region46: #{fnn_forward.1} parent=1 // pred_check
      _
    $region47: #{fnn_forward.1} parent=1 // pred_check_branch
      %108 = sbr.rel (0) target = $region49
    $region48: #{fnn_forward.1} parent=1 // pred_region
      %109 = dma.done [#allocation9], 4096
    $region49: #{fnn_forward.1} parent=1 // pred_fallthru
      _
    // Predicated region
    $region50: #{fnn_forward.1} parent=1 // pred_check
      _
    $region51: #{fnn_forward.1} parent=1 // pred_check_branch
      %111 = sbr.rel (0) target = $region53
    $region52: #{fnn_forward.1} parent=1 // pred_region
      %112 = dma.done [#allocation12], 128
    $region53: #{fnn_forward.1} parent=1 // pred_fallthru
      _
    // Predicated region
    $region54: #{fnn_forward.1} parent=1 // pred_check
      _
    $region55: #{fnn_forward.1} parent=1 // pred_check_branch
      %114 = sbr.rel (0) target = $region57
    $region56: #{fnn_forward.1} parent=1 // pred_region
      %115 = dma.done [#allocation12], 64
    $region57: #{fnn_forward.1} parent=1 // pred_fallthru
      _
    %v117 = vld [vmem:[#allocation2] sm:$0x1f]
    %v118 = vld [vmem:[#allocation2 + $0x8] sm:$0x1f]
    %v119 = vld [vmem:[#allocation2 + $0x10] sm:$0x1f]
    %v120 = vld [vmem:[#allocation2 + $0x18] sm:$0x1f]
    %v121 = vpack.c.bf16 %v117, %v117
    %v122 = vpack.c.bf16 %v118, %v118
    %v123 = vpack.c.bf16 %v119, %v119
    %v124 = vpack.c.bf16 %v120, %v120
    %v125 = vld [vmem:[#allocation5] sm:$0xff]
    %v126 = vld [vmem:[#allocation5 + $0x8] sm:$0xff]
    %v127 = vld [vmem:[#allocation5 + $0x10] sm:$0xff]
    %v128 = vld [vmem:[#allocation5 + $0x18] sm:$0xff]
    %v129 = vld [vmem:[#allocation5 + $0x20] sm:$0xff]
    %v130 = vld [vmem:[#allocation5 + $0x28] sm:$0xff]
    %v131 = vld [vmem:[#allocation5 + $0x30] sm:$0xff]
    %v132 = vld [vmem:[#allocation5 + $0x38] sm:$0xff]
    %v133 = vld [vmem:[#allocation5 + $0x40] sm:$0xff]
    %v134 = vld [vmem:[#allocation5 + $0x48] sm:$0xff]
    %v135 = vld [vmem:[#allocation5 + $0x50] sm:$0xff]
    %v136 = vld [vmem:[#allocation5 + $0x58] sm:$0xff]
    %v137 = vld [vmem:[#allocation5 + $0x60] sm:$0xff]
    %v138 = vld [vmem:[#allocation5 + $0x68] sm:$0xff]
    %v139 = vld [vmem:[#allocation5 + $0x70] sm:$0xff]
    %v140 = vld [vmem:[#allocation5 + $0x78] sm:$0xff]
    %v141 = vpack.c.bf16 %v126, %v125
    %v142 = vpack.c.bf16 %v128, %v127
    %v143 = vpack.c.bf16 %v130, %v129
    %v144 = vpack.c.bf16 %v132, %v131
    %v145 = vpack.c.bf16 %v134, %v133
    %v146 = vpack.c.bf16 %v136, %v135
    %v147 = vpack.c.bf16 %v138, %v137
    %v148 = vpack.c.bf16 %v140, %v139
    %v149 = vld [vmem:[#allocation7] sm:$0xff]
    %v150 = vld [vmem:[#allocation7 + $0x8] sm:$0xff]
    %v151 = vld [vmem:[#allocation7 + $0x10] sm:$0xff]
    %v152 = vld [vmem:[#allocation7 + $0x18] sm:$0xff]
    %v153 = vld [vmem:[#allocation7 + $0x20] sm:$0xff]
    %v154 = vld [vmem:[#allocation7 + $0x28] sm:$0xff]
    %v155 = vld [vmem:[#allocation7 + $0x30] sm:$0xff]
    %v156 = vld [vmem:[#allocation7 + $0x38] sm:$0xff]
    %v157 = vld [vmem:[#allocation7 + $0x40] sm:$0xff]
    %v158 = vld [vmem:[#allocation7 + $0x48] sm:$0xff]
    %v159 = vld [vmem:[#allocation7 + $0x50] sm:$0xff]
    %v160 = vld [vmem:[#allocation7 + $0x58] sm:$0xff]
    %v161 = vld [vmem:[#allocation7 + $0x60] sm:$0xff]
    %v162 = vld [vmem:[#allocation7 + $0x68] sm:$0xff]
    %v163 = vld [vmem:[#allocation7 + $0x70] sm:$0xff]
    %v164 = vld [vmem:[#allocation7 + $0x78] sm:$0xff]
    %166 = vset.pattern.permute.xlu0 0
    %167 = vperm.xlu0 %166, %v149
    %v168 = vpop.permute.xlu0 %167
    %171 = vset.pattern.permute.xlu0 0
    %172 = vperm.xlu0 %171, %v150
    %v173 = vpop.permute.xlu0 %172
    %176 = vset.pattern.permute.xlu0 0
    %177 = vperm.xlu0 %176, %v151
    %v178 = vpop.permute.xlu0 %177
    %181 = vset.pattern.permute.xlu0 0
    %182 = vperm.xlu0 %181, %v152
    %v183 = vpop.permute.xlu0 %182
    %186 = vset.pattern.permute.xlu0 0
    %187 = vperm.xlu0 %186, %v153
    %v188 = vpop.permute.xlu0 %187
    %191 = vset.pattern.permute.xlu0 0
    %192 = vperm.xlu0 %191, %v154
    %v193 = vpop.permute.xlu0 %192
    %196 = vset.pattern.permute.xlu0 0
    %197 = vperm.xlu0 %196, %v155
    %v198 = vpop.permute.xlu0 %197
    %201 = vset.pattern.permute.xlu0 0
    %202 = vperm.xlu0 %201, %v156
    %v203 = vpop.permute.xlu0 %202
    %206 = vset.pattern.permute.xlu0 0
    %207 = vperm.xlu0 %206, %v157
    %v208 = vpop.permute.xlu0 %207
    %211 = vset.pattern.permute.xlu0 0
    %212 = vperm.xlu0 %211, %v158
    %v213 = vpop.permute.xlu0 %212
    %216 = vset.pattern.permute.xlu0 0
    %217 = vperm.xlu0 %216, %v159
    %v218 = vpop.permute.xlu0 %217
    %221 = vset.pattern.permute.xlu0 0
    %222 = vperm.xlu0 %221, %v160
    %v223 = vpop.permute.xlu0 %222
    %226 = vset.pattern.permute.xlu0 0
    %227 = vperm.xlu0 %226, %v161
    %v228 = vpop.permute.xlu0 %227
    %231 = vset.pattern.permute.xlu0 0
    %232 = vperm.xlu0 %231, %v162
    %v233 = vpop.permute.xlu0 %232
    %236 = vset.pattern.permute.xlu0 0
    %237 = vperm.xlu0 %236, %v163
    %v238 = vpop.permute.xlu0 %237
    %241 = vset.pattern.permute.xlu0 0
    %242 = vperm.xlu0 %241, %v164
    %v243 = vpop.permute.xlu0 %242
    %vm245 = vcmask 39936
    %v247 = vsel %vm245, %v141, 0
    %v250 = vsel %vm245, %v142, 0
    %v253 = vsel %vm245, %v143, 0
    %v256 = vsel %vm245, %v144, 0
    %v259 = vsel %vm245, %v145, 0
    %v262 = vsel %vm245, %v146, 0
    %v265 = vsel %vm245, %v147, 0
    %v268 = vsel %vm245, %v148, 0
    %vm270 = vcmask 1041408
    %vm271 = vcmask 1042432
    %v272 = vsel %vm270, 4294967295, 65535
    %v273 = vsel %vm271, %v272, 0
    %v275 = vand.u32 %v121, %v273
    %v278 = vand.u32 %v122, %v273
    %v281 = vand.u32 %v123, %v273
    %v284 = vand.u32 %v124, %v273
    %286 = vmatprep.subr.bf16.mxu0 %v278
    %287 = vmatpush1.bf16.msra.mxu0 %v275
    %288 = vmatprep.subr.bf16.mxu0 0
    %289 = vmatpush1.bf16.msra.mxu0 0
    %290 = vmatprep.subr.bf16.mxu0 0
    %291 = vmatpush1.bf16.msra.mxu0 0
    %292 = vmatprep.subr.bf16.mxu0 0
    %293 = vmatpush1.bf16.msra.mxu0 0
    %294 = vmatprep.subr.bf16.mxu0 0
    %295 = vmatpush1.bf16.msra.mxu0 0
    %296 = vmatprep.subr.bf16.mxu0 0
    %297 = vmatpush1.bf16.msra.mxu0 0
    %298 = vmatprep.subr.bf16.mxu0 0
    %299 = vmatpush1.bf16.msra.mxu0 0
    %300 = vmatprep.subr.bf16.mxu0 0
    %301 = vmatpush1.bf16.msra.mxu0 0
    %302 = vmatprep.subr.bf16.mxu0 0
    %303 = vmatpush1.bf16.msra.mxu0 0
    %304 = vmatprep.subr.bf16.mxu0 0
    %305 = vmatpush1.bf16.msra.mxu0 0
    %306 = vmatprep.subr.bf16.mxu0 0
    %307 = vmatpush1.bf16.msra.mxu0 0
    %308 = vmatprep.subr.bf16.mxu0 0
    %309 = vmatpush1.bf16.msra.mxu0 0
    %310 = vmatprep.subr.bf16.mxu0 0
    %311 = vmatpush1.bf16.msra.mxu0 0
    %312 = vmatprep.subr.bf16.mxu0 0
    %313 = vmatpush1.bf16.msra.mxu0 0
    %314 = vmatprep.subr.bf16.mxu0 0
    %315 = vmatpush1.bf16.msra.mxu0 0
    %316 = vmatprep.subr.bf16.mxu0 0
    %317 = vmatpush1.bf16.msra.mxu0 0
    %318 = vmatprep.mubr.bf16.mxu0 0
    %319 = vmatmul.mubr.bf16.gmra.mrb[0].mxu0 %v247
    %v320 = vpop.f32.mrb[0].mxu0
    %v321 = vadd.f32 %v168, %v320
    %v322 = vpop.f32.mrb[0].mxu0
    %v323 = vadd.f32 %v168, %v322
    %v324 = vpop.f32.mrb[0].mxu0
    %v325 = vadd.f32 %v173, %v324
    %v326 = vpop.f32.mrb[0].mxu0
    %v327 = vadd.f32 %v173, %v326
    %328 = vmatprep.mubr.bf16.mxu0 0
    %329 = vmatmul.mubr.bf16.gmra.mrb[0].mxu0 %v250
    %v330 = vpop.f32.mrb[0].mxu0
    %v331 = vadd.f32 %v178, %v330
    %v332 = vpop.f32.mrb[0].mxu0
    %v333 = vadd.f32 %v178, %v332
    %v334 = vpop.f32.mrb[0].mxu0
    %v335 = vadd.f32 %v183, %v334
    %v336 = vpop.f32.mrb[0].mxu0
    %v337 = vadd.f32 %v183, %v336
    %338 = vmatprep.mubr.bf16.mxu0 0
    %339 = vmatmul.mubr.bf16.gmra.mrb[0].mxu0 %v253
    %v340 = vpop.f32.mrb[0].mxu0
    %v341 = vadd.f32 %v188, %v340
    %v342 = vpop.f32.mrb[0].mxu0
    %v343 = vadd.f32 %v188, %v342
    %v344 = vpop.f32.mrb[0].mxu0
    %v345 = vadd.f32 %v193, %v344
    %v346 = vpop.f32.mrb[0].mxu0
    %v347 = vadd.f32 %v193, %v346
    %348 = vmatprep.mubr.bf16.mxu0 0
    %349 = vmatmul.mubr.bf16.gmra.mrb[0].mxu0 %v256
    %v350 = vpop.f32.mrb[0].mxu0
    %v351 = vadd.f32 %v198, %v350
    %v352 = vpop.f32.mrb[0].mxu0
    %v353 = vadd.f32 %v198, %v352
    %v354 = vpop.f32.mrb[0].mxu0
    %v355 = vadd.f32 %v203, %v354
    %v356 = vpop.f32.mrb[0].mxu0
    %v357 = vadd.f32 %v203, %v356
    %358 = vmatprep.mubr.bf16.mxu0 0
    %359 = vmatmul.mubr.bf16.gmra.mrb[0].mxu0 %v259
    %v360 = vpop.f32.mrb[0].mxu0
    %v361 = vadd.f32 %v208, %v360
    %v362 = vpop.f32.mrb[0].mxu0
    %v363 = vadd.f32 %v208, %v362
    %v364 = vpop.f32.mrb[0].mxu0
    %v365 = vadd.f32 %v213, %v364
    %v366 = vpop.f32.mrb[0].mxu0
    %v367 = vadd.f32 %v213, %v366
    %368 = vmatprep.mubr.bf16.mxu0 0
    %369 = vmatmul.mubr.bf16.gmra.mrb[0].mxu0 %v262
    %v370 = vpop.f32.mrb[0].mxu0
    %v371 = vadd.f32 %v218, %v370
    %v372 = vpop.f32.mrb[0].mxu0
    %v373 = vadd.f32 %v218, %v372
    %v374 = vpop.f32.mrb[0].mxu0
    %v375 = vadd.f32 %v223, %v374
    %v376 = vpop.f32.mrb[0].mxu0
    %v377 = vadd.f32 %v223, %v376
    %378 = vmatprep.mubr.bf16.mxu0 0
    %379 = vmatmul.mubr.bf16.gmra.mrb[0].mxu0 %v265
    %v380 = vpop.f32.mrb[0].mxu0
    %v381 = vadd.f32 %v228, %v380
    %v382 = vpop.f32.mrb[0].mxu0
    %v383 = vadd.f32 %v228, %v382
    %v384 = vpop.f32.mrb[0].mxu0
    %v385 = vadd.f32 %v233, %v384
    %v386 = vpop.f32.mrb[0].mxu0
    %v387 = vadd.f32 %v233, %v386
    %388 = vmatprep.mubr.bf16.mxu0 0
    %389 = vmatmul.mubr.bf16.gmra.mrb[0].mxu0 %v268
    %v390 = vpop.f32.mrb[0].mxu0
    %v391 = vadd.f32 %v238, %v390
    %v392 = vpop.f32.mrb[0].mxu0
    %v393 = vadd.f32 %v238, %v392
    %v394 = vpop.f32.mrb[0].mxu0
    %v395 = vadd.f32 %v243, %v394
    %v396 = vpop.f32.mrb[0].mxu0
    %v397 = vadd.f32 %v243, %v396
    %398 = vdwg.mxu0
    %399 = vmatprep.subr.bf16.mxu0 %v284
    %400 = vmatpush1.bf16.msra.mxu0 %v281
    %401 = vmatprep.subr.bf16.mxu0 0
    %402 = vmatpush1.bf16.msra.mxu0 0
    %403 = vmatprep.subr.bf16.mxu0 0
    %404 = vmatpush1.bf16.msra.mxu0 0
    %405 = vmatprep.subr.bf16.mxu0 0
    %406 = vmatpush1.bf16.msra.mxu0 0
    %407 = vmatprep.subr.bf16.mxu0 0
    %408 = vmatpush1.bf16.msra.mxu0 0
    %409 = vmatprep.subr.bf16.mxu0 0
    %410 = vmatpush1.bf16.msra.mxu0 0
    %411 = vmatprep.subr.bf16.mxu0 0
    %412 = vmatpush1.bf16.msra.mxu0 0
    %413 = vmatprep.subr.bf16.mxu0 0
    %414 = vmatpush1.bf16.msra.mxu0 0
    %415 = vmatprep.subr.bf16.mxu0 0
    %416 = vmatpush1.bf16.msra.mxu0 0
    %417 = vmatprep.subr.bf16.mxu0 0
    %418 = vmatpush1.bf16.msra.mxu0 0
    %419 = vmatprep.subr.bf16.mxu0 0
    %420 = vmatpush1.bf16.msra.mxu0 0
    %421 = vmatprep.subr.bf16.mxu0 0
    %422 = vmatpush1.bf16.msra.mxu0 0
    %423 = vmatprep.subr.bf16.mxu0 0
    %424 = vmatpush1.bf16.msra.mxu0 0
    %425 = vmatprep.subr.bf16.mxu0 0
    %426 = vmatpush1.bf16.msra.mxu0 0
    %427 = vmatprep.subr.bf16.mxu0 0
    %428 = vmatpush1.bf16.msra.mxu0 0
    %429 = vmatprep.subr.bf16.mxu0 0
    %430 = vmatpush1.bf16.msra.mxu0 0
    %431 = vmatprep.mubr.bf16.mxu0 0
    %432 = vmatmul.mubr.bf16.gmra.mrb[0].mxu0 %v247
    %v433 = vpop.f32.mrb[0].mxu0
    %v434 = vadd.f32 %v168, %v433
    %v435 = vpop.f32.mrb[0].mxu0
    %v436 = vadd.f32 %v168, %v435
    %v437 = vpop.f32.mrb[0].mxu0
    %v438 = vadd.f32 %v173, %v437
    %v439 = vpop.f32.mrb[0].mxu0
    %v440 = vadd.f32 %v173, %v439
    %441 = vmatprep.mubr.bf16.mxu0 0
    %442 = vmatmul.mubr.bf16.gmra.mrb[0].mxu0 %v250
    %v443 = vpop.f32.mrb[0].mxu0
    %v444 = vadd.f32 %v178, %v443
    %v445 = vpop.f32.mrb[0].mxu0
    %v446 = vadd.f32 %v178, %v445
    %v447 = vpop.f32.mrb[0].mxu0
    %v448 = vadd.f32 %v183, %v447
    %v449 = vpop.f32.mrb[0].mxu0
    %v450 = vadd.f32 %v183, %v449
    %451 = vmatprep.mubr.bf16.mxu0 0
    %452 = vmatmul.mubr.bf16.gmra.mrb[0].mxu0 %v253
    %v453 = vpop.f32.mrb[0].mxu0
    %v454 = vadd.f32 %v188, %v453
    %v455 = vpop.f32.mrb[0].mxu0
    %v456 = vadd.f32 %v188, %v455
    %v457 = vpop.f32.mrb[0].mxu0
    %v458 = vadd.f32 %v193, %v457
    %v459 = vpop.f32.mrb[0].mxu0
    %v460 = vadd.f32 %v193, %v459
    %461 = vmatprep.mubr.bf16.mxu0 0
    %462 = vmatmul.mubr.bf16.gmra.mrb[0].mxu0 %v256
    %v463 = vpop.f32.mrb[0].mxu0
    %v464 = vadd.f32 %v198, %v463
    %v465 = vpop.f32.mrb[0].mxu0
    %v466 = vadd.f32 %v198, %v465
    %v467 = vpop.f32.mrb[0].mxu0
    %v468 = vadd.f32 %v203, %v467
    %v469 = vpop.f32.mrb[0].mxu0
    %v470 = vadd.f32 %v203, %v469
    %471 = vmatprep.mubr.bf16.mxu0 0
    %472 = vmatmul.mubr.bf16.gmra.mrb[0].mxu0 %v259
    %v473 = vpop.f32.mrb[0].mxu0
    %v474 = vadd.f32 %v208, %v473
    %v475 = vpop.f32.mrb[0].mxu0
    %v476 = vadd.f32 %v208, %v475
    %v477 = vpop.f32.mrb[0].mxu0
    %v478 = vadd.f32 %v213, %v477
    %v479 = vpop.f32.mrb[0].mxu0
    %v480 = vadd.f32 %v213, %v479
    %481 = vmatprep.mubr.bf16.mxu0 0
    %482 = vmatmul.mubr.bf16.gmra.mrb[0].mxu0 %v262
    %v483 = vpop.f32.mrb[0].mxu0
    %v484 = vadd.f32 %v218, %v483
    %v485 = vpop.f32.mrb[0].mxu0
    %v486 = vadd.f32 %v218, %v485
    %v487 = vpop.f32.mrb[0].mxu0
    %v488 = vadd.f32 %v223, %v487
    %v489 = vpop.f32.mrb[0].mxu0
    %v490 = vadd.f32 %v223, %v489
    %491 = vmatprep.mubr.bf16.mxu0 0
    %492 = vmatmul.mubr.bf16.gmra.mrb[0].mxu0 %v265
    %v493 = vpop.f32.mrb[0].mxu0
    %v494 = vadd.f32 %v228, %v493
    %v495 = vpop.f32.mrb[0].mxu0
    %v496 = vadd.f32 %v228, %v495
    %v497 = vpop.f32.mrb[0].mxu0
    %v498 = vadd.f32 %v233, %v497
    %v499 = vpop.f32.mrb[0].mxu0
    %v500 = vadd.f32 %v233, %v499
    %501 = vmatprep.mubr.bf16.mxu0 0
    %502 = vmatmul.mubr.bf16.gmra.mrb[0].mxu0 %v268
    %v503 = vpop.f32.mrb[0].mxu0
    %v504 = vadd.f32 %v238, %v503
    %v505 = vpop.f32.mrb[0].mxu0
    %v506 = vadd.f32 %v238, %v505
    %v507 = vpop.f32.mrb[0].mxu0
    %v508 = vadd.f32 %v243, %v507
    %v509 = vpop.f32.mrb[0].mxu0
    %v510 = vadd.f32 %v243, %v509
    %511 = vdwg.mxu0
    %v512 = vmax.f32 %v321, 0.0
    %v513 = vmax.f32 %v323, 0.0
    %v514 = vmax.f32 %v434, 0.0
    %v515 = vmax.f32 %v436, 0.0
    %v516 = vmax.f32 %v325, 0.0
    %v517 = vmax.f32 %v327, 0.0
    %v518 = vmax.f32 %v438, 0.0
    %v519 = vmax.f32 %v440, 0.0
    %v520 = vmax.f32 %v331, 0.0
    %v521 = vmax.f32 %v333, 0.0
    %v522 = vmax.f32 %v444, 0.0
    %v523 = vmax.f32 %v446, 0.0
    %v524 = vmax.f32 %v335, 0.0
    %v525 = vmax.f32 %v337, 0.0
    %v526 = vmax.f32 %v448, 0.0
    %v527 = vmax.f32 %v450, 0.0
    %v528 = vmax.f32 %v341, 0.0
    %v529 = vmax.f32 %v343, 0.0
    %v530 = vmax.f32 %v454, 0.0
    %v531 = vmax.f32 %v456, 0.0
    %v532 = vmax.f32 %v345, 0.0
    %v533 = vmax.f32 %v347, 0.0
    %v534 = vmax.f32 %v458, 0.0
    %v535 = vmax.f32 %v460, 0.0
    %v536 = vmax.f32 %v351, 0.0
    %v537 = vmax.f32 %v353, 0.0
    %v538 = vmax.f32 %v464, 0.0
    %v539 = vmax.f32 %v466, 0.0
    %v540 = vmax.f32 %v355, 0.0
    %v541 = vmax.f32 %v357, 0.0
    %v542 = vmax.f32 %v468, 0.0
    %v543 = vmax.f32 %v470, 0.0
    %v544 = vmax.f32 %v361, 0.0
    %v545 = vmax.f32 %v363, 0.0
    %v546 = vmax.f32 %v474, 0.0
    %v547 = vmax.f32 %v476, 0.0
    %v548 = vmax.f32 %v365, 0.0
    %v549 = vmax.f32 %v367, 0.0
    %v550 = vmax.f32 %v478, 0.0
    %v551 = vmax.f32 %v480, 0.0
    %v552 = vmax.f32 %v371, 0.0
    %v553 = vmax.f32 %v373, 0.0
    %v554 = vmax.f32 %v484, 0.0
    %v555 = vmax.f32 %v486, 0.0
    %v556 = vmax.f32 %v375, 0.0
    %v557 = vmax.f32 %v377, 0.0
    %v558 = vmax.f32 %v488, 0.0
    %v559 = vmax.f32 %v490, 0.0
    %v560 = vmax.f32 %v381, 0.0
    %v561 = vmax.f32 %v383, 0.0
    %v562 = vmax.f32 %v494, 0.0
    %v563 = vmax.f32 %v496, 0.0
    %v564 = vmax.f32 %v385, 0.0
    %v565 = vmax.f32 %v387, 0.0
    %v566 = vmax.f32 %v498, 0.0
    %v567 = vmax.f32 %v500, 0.0
    %v568 = vmax.f32 %v391, 0.0
    %v569 = vmax.f32 %v393, 0.0
    %v570 = vmax.f32 %v504, 0.0
    %v571 = vmax.f32 %v506, 0.0
    %v572 = vmax.f32 %v395, 0.0
    %v573 = vmax.f32 %v397, 0.0
    %v574 = vmax.f32 %v508, 0.0
    %v575 = vmax.f32 %v510, 0.0
    %v576 = vld [vmem:[#allocation8] sm:$0xff]
    %v577 = vld [vmem:[#allocation8 + $0x8] sm:$0xff]
    %v578 = vld [vmem:[#allocation8 + $0x10] sm:$0xff]
    %v579 = vld [vmem:[#allocation8 + $0x18] sm:$0xff]
    %v580 = vld [vmem:[#allocation8 + $0x20] sm:$0xff]
    %v581 = vld [vmem:[#allocation8 + $0x28] sm:$0xff]
    %v582 = vld [vmem:[#allocation8 + $0x30] sm:$0xff]
    %v583 = vld [vmem:[#allocation8 + $0x38] sm:$0xff]
    %v584 = vld [vmem:[#allocation8 + $0x40] sm:$0xff]
    %v585 = vld [vmem:[#allocation8 + $0x48] sm:$0xff]
    %v586 = vld [vmem:[#allocation8 + $0x50] sm:$0xff]
    %v587 = vld [vmem:[#allocation8 + $0x58] sm:$0xff]
    %v588 = vld [vmem:[#allocation8 + $0x60] sm:$0xff]
    %v589 = vld [vmem:[#allocation8 + $0x68] sm:$0xff]
    %v590 = vld [vmem:[#allocation8 + $0x70] sm:$0xff]
    %v591 = vld [vmem:[#allocation8 + $0x78] sm:$0xff]
    %v592 = vld [vmem:[#allocation8 + $0x80] sm:$0xff]
    %v593 = vld [vmem:[#allocation8 + $0x88] sm:$0xff]
    %v594 = vld [vmem:[#allocation8 + $0x90] sm:$0xff]
    %v595 = vld [vmem:[#allocation8 + $0x98] sm:$0xff]
    %v596 = vld [vmem:[#allocation8 + $0xa0] sm:$0xff]
    %v597 = vld [vmem:[#allocation8 + $0xa8] sm:$0xff]
    %v598 = vld [vmem:[#allocation8 + $0xb0] sm:$0xff]
    %v599 = vld [vmem:[#allocation8 + $0xb8] sm:$0xff]
    %v600 = vld [vmem:[#allocation8 + $0xc0] sm:$0xff]
    %v601 = vld [vmem:[#allocation8 + $0xc8] sm:$0xff]
    %v602 = vld [vmem:[#allocation8 + $0xd0] sm:$0xff]
    %v603 = vld [vmem:[#allocation8 + $0xd8] sm:$0xff]
    %v604 = vld [vmem:[#allocation8 + $0xe0] sm:$0xff]
    %v605 = vld [vmem:[#allocation8 + $0xe8] sm:$0xff]
    %v606 = vld [vmem:[#allocation8 + $0xf0] sm:$0xff]
    %v607 = vld [vmem:[#allocation8 + $0xf8] sm:$0xff]
    %v608 = vpack.c.bf16 %v577, %v576
    %v609 = vpack.c.bf16 %v579, %v578
    %v610 = vpack.c.bf16 %v581, %v580
    %v611 = vpack.c.bf16 %v583, %v582
    %v612 = vpack.c.bf16 %v585, %v584
    %v613 = vpack.c.bf16 %v587, %v586
    %v614 = vpack.c.bf16 %v589, %v588
    %v615 = vpack.c.bf16 %v591, %v590
    %v616 = vpack.c.bf16 %v593, %v592
    %v617 = vpack.c.bf16 %v595, %v594
    %v618 = vpack.c.bf16 %v597, %v596
    %v619 = vpack.c.bf16 %v599, %v598
    %v620 = vpack.c.bf16 %v601, %v600
    %v621 = vpack.c.bf16 %v603, %v602
    %v622 = vpack.c.bf16 %v605, %v604
    %v623 = vpack.c.bf16 %v607, %v606
    %v624 = vpack.c.bf16 %v516, %v512
    %v625 = vpack.c.bf16 %v517, %v513
    %v626 = vpack.c.bf16 %v518, %v514
    %v627 = vpack.c.bf16 %v519, %v515
    %v628 = vpack.c.bf16 %v524, %v520
    %v629 = vpack.c.bf16 %v525, %v521
    %v630 = vpack.c.bf16 %v526, %v522
    %v631 = vpack.c.bf16 %v527, %v523
    %v632 = vpack.c.bf16 %v532, %v528
    %v633 = vpack.c.bf16 %v533, %v529
    %v634 = vpack.c.bf16 %v534, %v530
    %v635 = vpack.c.bf16 %v535, %v531
    %v636 = vpack.c.bf16 %v540, %v536
    %v637 = vpack.c.bf16 %v541, %v537
    %v638 = vpack.c.bf16 %v542, %v538
    %v639 = vpack.c.bf16 %v543, %v539
    %v640 = vpack.c.bf16 %v548, %v544
    %v641 = vpack.c.bf16 %v549, %v545
    %v642 = vpack.c.bf16 %v550, %v546
    %v643 = vpack.c.bf16 %v551, %v547
    %v644 = vpack.c.bf16 %v556, %v552
    %v645 = vpack.c.bf16 %v557, %v553
    %v646 = vpack.c.bf16 %v558, %v554
    %v647 = vpack.c.bf16 %v559, %v555
    %v648 = vpack.c.bf16 %v564, %v560
    %v649 = vpack.c.bf16 %v565, %v561
    %v650 = vpack.c.bf16 %v566, %v562
    %v651 = vpack.c.bf16 %v567, %v563
    %v652 = vpack.c.bf16 %v572, %v568
    %v653 = vpack.c.bf16 %v573, %v569
    %v654 = vpack.c.bf16 %v574, %v570
    %v655 = vpack.c.bf16 %v575, %v571
    %v656 = vld [vmem:[#allocation10] sm:$0xff]
    %v657 = vld [vmem:[#allocation10 + $0x8] sm:$0xff]
    %v658 = vld [vmem:[#allocation10 + $0x10] sm:$0xff]
    %v659 = vld [vmem:[#allocation10 + $0x18] sm:$0xff]
    %v660 = vld [vmem:[#allocation10 + $0x20] sm:$0xff]
    %v661 = vld [vmem:[#allocation10 + $0x28] sm:$0xff]
    %v662 = vld [vmem:[#allocation10 + $0x30] sm:$0xff]
    %v663 = vld [vmem:[#allocation10 + $0x38] sm:$0xff]
    %v664 = vld [vmem:[#allocation10 + $0x40] sm:$0xff]
    %v665 = vld [vmem:[#allocation10 + $0x48] sm:$0xff]
    %v666 = vld [vmem:[#allocation10 + $0x50] sm:$0xff]
    %v667 = vld [vmem:[#allocation10 + $0x58] sm:$0xff]
    %v668 = vld [vmem:[#allocation10 + $0x60] sm:$0xff]
    %v669 = vld [vmem:[#allocation10 + $0x68] sm:$0xff]
    %v670 = vld [vmem:[#allocation10 + $0x70] sm:$0xff]
    %v671 = vld [vmem:[#allocation10 + $0x78] sm:$0xff]
    %v672 = vld [vmem:[#allocation10 + $0x80] sm:$0xff]
    %v673 = vld [vmem:[#allocation10 + $0x88] sm:$0xff]
    %v674 = vld [vmem:[#allocation10 + $0x90] sm:$0xff]
    %v675 = vld [vmem:[#allocation10 + $0x98] sm:$0xff]
    %v676 = vld [vmem:[#allocation10 + $0xa0] sm:$0xff]
    %v677 = vld [vmem:[#allocation10 + $0xa8] sm:$0xff]
    %v678 = vld [vmem:[#allocation10 + $0xb0] sm:$0xff]
    %v679 = vld [vmem:[#allocation10 + $0xb8] sm:$0xff]
    %v680 = vld [vmem:[#allocation10 + $0xc0] sm:$0xff]
    %v681 = vld [vmem:[#allocation10 + $0xc8] sm:$0xff]
    %v682 = vld [vmem:[#allocation10 + $0xd0] sm:$0xff]
    %v683 = vld [vmem:[#allocation10 + $0xd8] sm:$0xff]
    %v684 = vld [vmem:[#allocation10 + $0xe0] sm:$0xff]
    %v685 = vld [vmem:[#allocation10 + $0xe8] sm:$0xff]
    %v686 = vld [vmem:[#allocation10 + $0xf0] sm:$0xff]
    %v687 = vld [vmem:[#allocation10 + $0xf8] sm:$0xff]
    %689 = vset.pattern.permute.xlu0 0
    %690 = vperm.xlu0 %689, %v656
    %v691 = vpop.permute.xlu0 %690
    %694 = vset.pattern.permute.xlu0 0
    %695 = vperm.xlu0 %694, %v657
    %v696 = vpop.permute.xlu0 %695
    %699 = vset.pattern.permute.xlu0 0
    %700 = vperm.xlu0 %699, %v658
    %v701 = vpop.permute.xlu0 %700
    %704 = vset.pattern.permute.xlu0 0
    %705 = vperm.xlu0 %704, %v659
    %v706 = vpop.permute.xlu0 %705
    %709 = vset.pattern.permute.xlu0 0
    %710 = vperm.xlu0 %709, %v660
    %v711 = vpop.permute.xlu0 %710
    %714 = vset.pattern.permute.xlu0 0
    %715 = vperm.xlu0 %714, %v661
    %v716 = vpop.permute.xlu0 %715
    %719 = vset.pattern.permute.xlu0 0
    %720 = vperm.xlu0 %719, %v662
    %v721 = vpop.permute.xlu0 %720
    %724 = vset.pattern.permute.xlu0 0
    %725 = vperm.xlu0 %724, %v663
    %v726 = vpop.permute.xlu0 %725
    %729 = vset.pattern.permute.xlu0 0
    %730 = vperm.xlu0 %729, %v664
    %v731 = vpop.permute.xlu0 %730
    %734 = vset.pattern.permute.xlu0 0
    %735 = vperm.xlu0 %734, %v665
    %v736 = vpop.permute.xlu0 %735
    %739 = vset.pattern.permute.xlu0 0
    %740 = vperm.xlu0 %739, %v666
    %v741 = vpop.permute.xlu0 %740
    %744 = vset.pattern.permute.xlu0 0
    %745 = vperm.xlu0 %744, %v667
    %v746 = vpop.permute.xlu0 %745
    %749 = vset.pattern.permute.xlu0 0
    %750 = vperm.xlu0 %749, %v668
    %v751 = vpop.permute.xlu0 %750
    %754 = vset.pattern.permute.xlu0 0
    %755 = vperm.xlu0 %754, %v669
    %v756 = vpop.permute.xlu0 %755
    %759 = vset.pattern.permute.xlu0 0
    %760 = vperm.xlu0 %759, %v670
    %v761 = vpop.permute.xlu0 %760
    %764 = vset.pattern.permute.xlu0 0
    %765 = vperm.xlu0 %764, %v671
    %v766 = vpop.permute.xlu0 %765
    %769 = vset.pattern.permute.xlu0 0
    %770 = vperm.xlu0 %769, %v672
    %v771 = vpop.permute.xlu0 %770
    %774 = vset.pattern.permute.xlu0 0
    %775 = vperm.xlu0 %774, %v673
    %v776 = vpop.permute.xlu0 %775
    %779 = vset.pattern.permute.xlu0 0
    %780 = vperm.xlu0 %779, %v674
    %v781 = vpop.permute.xlu0 %780
    %784 = vset.pattern.permute.xlu0 0
    %785 = vperm.xlu0 %784, %v675
    %v786 = vpop.permute.xlu0 %785
    %789 = vset.pattern.permute.xlu0 0
    %790 = vperm.xlu0 %789, %v676
    %v791 = vpop.permute.xlu0 %790
    %794 = vset.pattern.permute.xlu0 0
    %795 = vperm.xlu0 %794, %v677
    %v796 = vpop.permute.xlu0 %795
    %799 = vset.pattern.permute.xlu0 0
    %800 = vperm.xlu0 %799, %v678
    %v801 = vpop.permute.xlu0 %800
    %804 = vset.pattern.permute.xlu0 0
    %805 = vperm.xlu0 %804, %v679
    %v806 = vpop.permute.xlu0 %805
    %809 = vset.pattern.permute.xlu0 0
    %810 = vperm.xlu0 %809, %v680
    %v811 = vpop.permute.xlu0 %810
    %814 = vset.pattern.permute.xlu0 0
    %815 = vperm.xlu0 %814, %v681
    %v816 = vpop.permute.xlu0 %815
    %819 = vset.pattern.permute.xlu0 0
    %820 = vperm.xlu0 %819, %v682
    %v821 = vpop.permute.xlu0 %820
    %824 = vset.pattern.permute.xlu0 0
    %825 = vperm.xlu0 %824, %v683
    %v826 = vpop.permute.xlu0 %825
    %829 = vset.pattern.permute.xlu0 0
    %830 = vperm.xlu0 %829, %v684
    %v831 = vpop.permute.xlu0 %830
    %834 = vset.pattern.permute.xlu0 0
    %835 = vperm.xlu0 %834, %v685
    %v836 = vpop.permute.xlu0 %835
    %839 = vset.pattern.permute.xlu0 0
    %840 = vperm.xlu0 %839, %v686
    %v841 = vpop.permute.xlu0 %840
    %844 = vset.pattern.permute.xlu0 0
    %845 = vperm.xlu0 %844, %v687
    %v846 = vpop.permute.xlu0 %845
    %848 = vmatprep.subr.bf16.mxu0 %v625
    %849 = vmatpush1.bf16.msra.mxu0 %v624
    %850 = vmatprep.subr.bf16.mxu0 %v629
    %851 = vmatpush1.bf16.msra.mxu0 %v628
    %852 = vmatprep.subr.bf16.mxu0 %v633
    %853 = vmatpush1.bf16.msra.mxu0 %v632
    %854 = vmatprep.subr.bf16.mxu0 %v637
    %855 = vmatpush1.bf16.msra.mxu0 %v636
    %856 = vmatprep.subr.bf16.mxu0 %v641
    %857 = vmatpush1.bf16.msra.mxu0 %v640
    %858 = vmatprep.subr.bf16.mxu0 %v645
    %859 = vmatpush1.bf16.msra.mxu0 %v644
    %860 = vmatprep.subr.bf16.mxu0 %v649
    %861 = vmatpush1.bf16.msra.mxu0 %v648
    %862 = vmatprep.subr.bf16.mxu0 %v653
    %863 = vmatpush1.bf16.msra.mxu0 %v652
    %864 = vmatprep.subr.bf16.mxu0 0
    %865 = vmatpush1.bf16.msra.mxu0 0
    %866 = vmatprep.subr.bf16.mxu0 0
    %867 = vmatpush1.bf16.msra.mxu0 0
    %868 = vmatprep.subr.bf16.mxu0 0
    %869 = vmatpush1.bf16.msra.mxu0 0
    %870 = vmatprep.subr.bf16.mxu0 0
    %871 = vmatpush1.bf16.msra.mxu0 0
    %872 = vmatprep.subr.bf16.mxu0 0
    %873 = vmatpush1.bf16.msra.mxu0 0
    %874 = vmatprep.subr.bf16.mxu0 0
    %875 = vmatpush1.bf16.msra.mxu0 0
    %876 = vmatprep.subr.bf16.mxu0 0
    %877 = vmatpush1.bf16.msra.mxu0 0
    %878 = vmatprep.subr.bf16.mxu0 0
    %879 = vmatpush1.bf16.msra.mxu0 0
    %880 = vmatprep.mubr.bf16.mxu0 0
    %881 = vmatmul.mubr.bf16.gmra.mrb[0].mxu0 %v608
    %v882 = vpop.f32.mrb[0].mxu0
    %v883 = vadd.f32 %v691, %v882
    %v884 = vpop.f32.mrb[0].mxu0
    %v885 = vadd.f32 %v691, %v884
    %v886 = vpop.f32.mrb[0].mxu0
    %v887 = vadd.f32 %v696, %v886
    %v888 = vpop.f32.mrb[0].mxu0
    %v889 = vadd.f32 %v696, %v888
    %890 = vmatprep.mubr.bf16.mxu0 0
    %891 = vmatmul.mubr.bf16.gmra.mrb[0].mxu0 %v609
    %v892 = vpop.f32.mrb[0].mxu0
    %v893 = vadd.f32 %v701, %v892
    %v894 = vpop.f32.mrb[0].mxu0
    %v895 = vadd.f32 %v701, %v894
    %v896 = vpop.f32.mrb[0].mxu0
    %v897 = vadd.f32 %v706, %v896
    %v898 = vpop.f32.mrb[0].mxu0
    %v899 = vadd.f32 %v706, %v898
    %900 = vmatprep.mubr.bf16.mxu0 0
    %901 = vmatmul.mubr.bf16.gmra.mrb[0].mxu0 %v610
    %v902 = vpop.f32.mrb[0].mxu0
    %v903 = vadd.f32 %v711, %v902
    %v904 = vpop.f32.mrb[0].mxu0
    %v905 = vadd.f32 %v711, %v904
    %v906 = vpop.f32.mrb[0].mxu0
    %v907 = vadd.f32 %v716, %v906
    %v908 = vpop.f32.mrb[0].mxu0
    %v909 = vadd.f32 %v716, %v908
    %910 = vmatprep.mubr.bf16.mxu0 0
    %911 = vmatmul.mubr.bf16.gmra.mrb[0].mxu0 %v611
    %v912 = vpop.f32.mrb[0].mxu0
    %v913 = vadd.f32 %v721, %v912
    %v914 = vpop.f32.mrb[0].mxu0
    %v915 = vadd.f32 %v721, %v914
    %v916 = vpop.f32.mrb[0].mxu0
    %v917 = vadd.f32 %v726, %v916
    %v918 = vpop.f32.mrb[0].mxu0
    %v919 = vadd.f32 %v726, %v918
    %920 = vmatprep.mubr.bf16.mxu0 0
    %921 = vmatmul.mubr.bf16.gmra.mrb[0].mxu0 %v612
    %v922 = vpop.f32.mrb[0].mxu0
    %v923 = vadd.f32 %v731, %v922
    %v924 = vpop.f32.mrb[0].mxu0
    %v925 = vadd.f32 %v731, %v924
    %v926 = vpop.f32.mrb[0].mxu0
    %v927 = vadd.f32 %v736, %v926
    %v928 = vpop.f32.mrb[0].mxu0
    %v929 = vadd.f32 %v736, %v928
    %930 = vmatprep.mubr.bf16.mxu0 0
    %931 = vmatmul.mubr.bf16.gmra.mrb[0].mxu0 %v613
    %v932 = vpop.f32.mrb[0].mxu0
    %v933 = vadd.f32 %v741, %v932
    %v934 = vpop.f32.mrb[0].mxu0
    %v935 = vadd.f32 %v741, %v934
    %v936 = vpop.f32.mrb[0].mxu0
    %v937 = vadd.f32 %v746, %v936
    %v938 = vpop.f32.mrb[0].mxu0
    %v939 = vadd.f32 %v746, %v938
    %940 = vmatprep.mubr.bf16.mxu0 0
    %941 = vmatmul.mubr.bf16.gmra.mrb[0].mxu0 %v614
    %v942 = vpop.f32.mrb[0].mxu0
    %v943 = vadd.f32 %v751, %v942
    %v944 = vpop.f32.mrb[0].mxu0
    %v945 = vadd.f32 %v751, %v944
    %v946 = vpop.f32.mrb[0].mxu0
    %v947 = vadd.f32 %v756, %v946
    %v948 = vpop.f32.mrb[0].mxu0
    %v949 = vadd.f32 %v756, %v948
    %950 = vmatprep.mubr.bf16.mxu0 0
    %951 = vmatmul.mubr.bf16.gmra.mrb[0].mxu0 %v615
    %v952 = vpop.f32.mrb[0].mxu0
    %v953 = vadd.f32 %v761, %v952
    %v954 = vpop.f32.mrb[0].mxu0
    %v955 = vadd.f32 %v761, %v954
    %v956 = vpop.f32.mrb[0].mxu0
    %v957 = vadd.f32 %v766, %v956
    %v958 = vpop.f32.mrb[0].mxu0
    %v959 = vadd.f32 %v766, %v958
    %960 = vmatprep.mubr.bf16.mxu0 0
    %961 = vmatmul.mubr.bf16.gmra.mrb[0].mxu0 %v616
    %v962 = vpop.f32.mrb[0].mxu0
    %v963 = vadd.f32 %v771, %v962
    %v964 = vpop.f32.mrb[0].mxu0
    %v965 = vadd.f32 %v771, %v964
    %v966 = vpop.f32.mrb[0].mxu0
    %v967 = vadd.f32 %v776, %v966
    %v968 = vpop.f32.mrb[0].mxu0
    %v969 = vadd.f32 %v776, %v968
    %970 = vmatprep.mubr.bf16.mxu0 0
    %971 = vmatmul.mubr.bf16.gmra.mrb[0].mxu0 %v617
    %v972 = vpop.f32.mrb[0].mxu0
    %v973 = vadd.f32 %v781, %v972
    %v974 = vpop.f32.mrb[0].mxu0
    %v975 = vadd.f32 %v781, %v974
    %v976 = vpop.f32.mrb[0].mxu0
    %v977 = vadd.f32 %v786, %v976
    %v978 = vpop.f32.mrb[0].mxu0
    %v979 = vadd.f32 %v786, %v978
    %980 = vmatprep.mubr.bf16.mxu0 0
    %981 = vmatmul.mubr.bf16.gmra.mrb[0].mxu0 %v618
    %v982 = vpop.f32.mrb[0].mxu0
    %v983 = vadd.f32 %v791, %v982
    %v984 = vpop.f32.mrb[0].mxu0
    %v985 = vadd.f32 %v791, %v984
    %v986 = vpop.f32.mrb[0].mxu0
    %v987 = vadd.f32 %v796, %v986
    %v988 = vpop.f32.mrb[0].mxu0
    %v989 = vadd.f32 %v796, %v988
    %990 = vmatprep.mubr.bf16.mxu0 0
    %991 = vmatmul.mubr.bf16.gmra.mrb[0].mxu0 %v619
    %v992 = vpop.f32.mrb[0].mxu0
    %v993 = vadd.f32 %v801, %v992
    %v994 = vpop.f32.mrb[0].mxu0
    %v995 = vadd.f32 %v801, %v994
    %v996 = vpop.f32.mrb[0].mxu0
    %v997 = vadd.f32 %v806, %v996
    %v998 = vpop.f32.mrb[0].mxu0
    %v999 = vadd.f32 %v806, %v998
    %1000 = vmatprep.mubr.bf16.mxu0 0
    %1001 = vmatmul.mubr.bf16.gmra.mrb[0].mxu0 %v620
    %v1002 = vpop.f32.mrb[0].mxu0
    %v1003 = vadd.f32 %v811, %v1002
    %v1004 = vpop.f32.mrb[0].mxu0
    %v1005 = vadd.f32 %v811, %v1004
    %v1006 = vpop.f32.mrb[0].mxu0
    %v1007 = vadd.f32 %v816, %v1006
    %v1008 = vpop.f32.mrb[0].mxu0
    %v1009 = vadd.f32 %v816, %v1008
    %1010 = vmatprep.mubr.bf16.mxu0 0
    %1011 = vmatmul.mubr.bf16.gmra.mrb[0].mxu0 %v621
    %v1012 = vpop.f32.mrb[0].mxu0
    %v1013 = vadd.f32 %v821, %v1012
    %v1014 = vpop.f32.mrb[0].mxu0
    %v1015 = vadd.f32 %v821, %v1014
    %v1016 = vpop.f32.mrb[0].mxu0
    %v1017 = vadd.f32 %v826, %v1016
    %v1018 = vpop.f32.mrb[0].mxu0
    %v1019 = vadd.f32 %v826, %v1018
    %1020 = vmatprep.mubr.bf16.mxu0 0
    %1021 = vmatmul.mubr.bf16.gmra.mrb[0].mxu0 %v622
    %v1022 = vpop.f32.mrb[0].mxu0
    %v1023 = vadd.f32 %v831, %v1022
    %v1024 = vpop.f32.mrb[0].mxu0
    %v1025 = vadd.f32 %v831, %v1024
    %v1026 = vpop.f32.mrb[0].mxu0
    %v1027 = vadd.f32 %v836, %v1026
    %v1028 = vpop.f32.mrb[0].mxu0
    %v1029 = vadd.f32 %v836, %v1028
    %1030 = vmatprep.mubr.bf16.mxu0 0
    %1031 = vmatmul.mubr.bf16.gmra.mrb[0].mxu0 %v623
    %v1032 = vpop.f32.mrb[0].mxu0
    %v1033 = vadd.f32 %v841, %v1032
    %v1034 = vpop.f32.mrb[0].mxu0
    %v1035 = vadd.f32 %v841, %v1034
    %v1036 = vpop.f32.mrb[0].mxu0
    %v1037 = vadd.f32 %v846, %v1036
    %v1038 = vpop.f32.mrb[0].mxu0
    %v1039 = vadd.f32 %v846, %v1038
    %1040 = vdwg.mxu0
    %1041 = vmatprep.subr.bf16.mxu0 %v627
    %1042 = vmatpush1.bf16.msra.mxu0 %v626
    %1043 = vmatprep.subr.bf16.mxu0 %v631
    %1044 = vmatpush1.bf16.msra.mxu0 %v630
    %1045 = vmatprep.subr.bf16.mxu0 %v635
    %1046 = vmatpush1.bf16.msra.mxu0 %v634
    %1047 = vmatprep.subr.bf16.mxu0 %v639
    %1048 = vmatpush1.bf16.msra.mxu0 %v638
    %1049 = vmatprep.subr.bf16.mxu0 %v643
    %1050 = vmatpush1.bf16.msra.mxu0 %v642
    %1051 = vmatprep.subr.bf16.mxu0 %v647
    %1052 = vmatpush1.bf16.msra.mxu0 %v646
    %1053 = vmatprep.subr.bf16.mxu0 %v651
    %1054 = vmatpush1.bf16.msra.mxu0 %v650
    %1055 = vmatprep.subr.bf16.mxu0 %v655
    %1056 = vmatpush1.bf16.msra.mxu0 %v654
    %1057 = vmatprep.subr.bf16.mxu0 0
    %1058 = vmatpush1.bf16.msra.mxu0 0
    %1059 = vmatprep.subr.bf16.mxu0 0
    %1060 = vmatpush1.bf16.msra.mxu0 0
    %1061 = vmatprep.subr.bf16.mxu0 0
    %1062 = vmatpush1.bf16.msra.mxu0 0
    %1063 = vmatprep.subr.bf16.mxu0 0
    %1064 = vmatpush1.bf16.msra.mxu0 0
    %1065 = vmatprep.subr.bf16.mxu0 0
    %1066 = vmatpush1.bf16.msra.mxu0 0
    %1067 = vmatprep.subr.bf16.mxu0 0
    %1068 = vmatpush1.bf16.msra.mxu0 0
    %1069 = vmatprep.subr.bf16.mxu0 0
    %1070 = vmatpush1.bf16.msra.mxu0 0
    %1071 = vmatprep.subr.bf16.mxu0 0
    %1072 = vmatpush1.bf16.msra.mxu0 0
    %1073 = vmatprep.mubr.bf16.mxu0 0
    %1074 = vmatmul.mubr.bf16.gmra.mrb[0].mxu0 %v608
    %v1075 = vpop.f32.mrb[0].mxu0
    %v1076 = vadd.f32 %v691, %v1075
    %v1077 = vpop.f32.mrb[0].mxu0
    %v1078 = vadd.f32 %v691, %v1077
    %v1079 = vpop.f32.mrb[0].mxu0
    %v1080 = vadd.f32 %v696, %v1079
    %v1081 = vpop.f32.mrb[0].mxu0
    %v1082 = vadd.f32 %v696, %v1081
    %1083 = vmatprep.mubr.bf16.mxu0 0
    %1084 = vmatmul.mubr.bf16.gmra.mrb[0].mxu0 %v609
    %v1085 = vpop.f32.mrb[0].mxu0
    %v1086 = vadd.f32 %v701, %v1085
    %v1087 = vpop.f32.mrb[0].mxu0
    %v1088 = vadd.f32 %v701, %v1087
    %v1089 = vpop.f32.mrb[0].mxu0
    %v1090 = vadd.f32 %v706, %v1089
    %v1091 = vpop.f32.mrb[0].mxu0
    %v1092 = vadd.f32 %v706, %v1091
    %1093 = vmatprep.mubr.bf16.mxu0 0
    %1094 = vmatmul.mubr.bf16.gmra.mrb[0].mxu0 %v610
    %v1095 = vpop.f32.mrb[0].mxu0
    %v1096 = vadd.f32 %v711, %v1095
    %v1097 = vpop.f32.mrb[0].mxu0
    %v1098 = vadd.f32 %v711, %v1097
    %v1099 = vpop.f32.mrb[0].mxu0
    %v1100 = vadd.f32 %v716, %v1099
    %v1101 = vpop.f32.mrb[0].mxu0
    %v1102 = vadd.f32 %v716, %v1101
    %1103 = vmatprep.mubr.bf16.mxu0 0
    %1104 = vmatmul.mubr.bf16.gmra.mrb[0].mxu0 %v611
    %v1105 = vpop.f32.mrb[0].mxu0
    %v1106 = vadd.f32 %v721, %v1105
    %v1107 = vpop.f32.mrb[0].mxu0
    %v1108 = vadd.f32 %v721, %v1107
    %v1109 = vpop.f32.mrb[0].mxu0
    %v1110 = vadd.f32 %v726, %v1109
    %v1111 = vpop.f32.mrb[0].mxu0
    %v1112 = vadd.f32 %v726, %v1111
    %1113 = vmatprep.mubr.bf16.mxu0 0
    %1114 = vmatmul.mubr.bf16.gmra.mrb[0].mxu0 %v612
    %v1115 = vpop.f32.mrb[0].mxu0
    %v1116 = vadd.f32 %v731, %v1115
    %v1117 = vpop.f32.mrb[0].mxu0
    %v1118 = vadd.f32 %v731, %v1117
    %v1119 = vpop.f32.mrb[0].mxu0
    %v1120 = vadd.f32 %v736, %v1119
    %v1121 = vpop.f32.mrb[0].mxu0
    %v1122 = vadd.f32 %v736, %v1121
    %1123 = vmatprep.mubr.bf16.mxu0 0
    %1124 = vmatmul.mubr.bf16.gmra.mrb[0].mxu0 %v613
    %v1125 = vpop.f32.mrb[0].mxu0
    %v1126 = vadd.f32 %v741, %v1125
    %v1127 = vpop.f32.mrb[0].mxu0
    %v1128 = vadd.f32 %v741, %v1127
    %v1129 = vpop.f32.mrb[0].mxu0
    %v1130 = vadd.f32 %v746, %v1129
    %v1131 = vpop.f32.mrb[0].mxu0
    %v1132 = vadd.f32 %v746, %v1131
    %1133 = vmatprep.mubr.bf16.mxu0 0
    %1134 = vmatmul.mubr.bf16.gmra.mrb[0].mxu0 %v614
    %v1135 = vpop.f32.mrb[0].mxu0
    %v1136 = vadd.f32 %v751, %v1135
    %v1137 = vpop.f32.mrb[0].mxu0
    %v1138 = vadd.f32 %v751, %v1137
    %v1139 = vpop.f32.mrb[0].mxu0
    %v1140 = vadd.f32 %v756, %v1139
    %v1141 = vpop.f32.mrb[0].mxu0
    %v1142 = vadd.f32 %v756, %v1141
    %1143 = vmatprep.mubr.bf16.mxu0 0
    %1144 = vmatmul.mubr.bf16.gmra.mrb[0].mxu0 %v615
    %v1145 = vpop.f32.mrb[0].mxu0
    %v1146 = vadd.f32 %v761, %v1145
    %v1147 = vpop.f32.mrb[0].mxu0
    %v1148 = vadd.f32 %v761, %v1147
    %v1149 = vpop.f32.mrb[0].mxu0
    %v1150 = vadd.f32 %v766, %v1149
    %v1151 = vpop.f32.mrb[0].mxu0
    %v1152 = vadd.f32 %v766, %v1151
    %1153 = vmatprep.mubr.bf16.mxu0 0
    %1154 = vmatmul.mubr.bf16.gmra.mrb[0].mxu0 %v616
    %v1155 = vpop.f32.mrb[0].mxu0
    %v1156 = vadd.f32 %v771, %v1155
    %v1157 = vpop.f32.mrb[0].mxu0
    %v1158 = vadd.f32 %v771, %v1157
    %v1159 = vpop.f32.mrb[0].mxu0
    %v1160 = vadd.f32 %v776, %v1159
    %v1161 = vpop.f32.mrb[0].mxu0
    %v1162 = vadd.f32 %v776, %v1161
    %1163 = vmatprep.mubr.bf16.mxu0 0
    %1164 = vmatmul.mubr.bf16.gmra.mrb[0].mxu0 %v617
    %v1165 = vpop.f32.mrb[0].mxu0
    %v1166 = vadd.f32 %v781, %v1165
    %v1167 = vpop.f32.mrb[0].mxu0
    %v1168 = vadd.f32 %v781, %v1167
    %v1169 = vpop.f32.mrb[0].mxu0
    %v1170 = vadd.f32 %v786, %v1169
    %v1171 = vpop.f32.mrb[0].mxu0
    %v1172 = vadd.f32 %v786, %v1171
    %1173 = vmatprep.mubr.bf16.mxu0 0
    %1174 = vmatmul.mubr.bf16.gmra.mrb[0].mxu0 %v618
    %v1175 = vpop.f32.mrb[0].mxu0
    %v1176 = vadd.f32 %v791, %v1175
    %v1177 = vpop.f32.mrb[0].mxu0
    %v1178 = vadd.f32 %v791, %v1177
    %v1179 = vpop.f32.mrb[0].mxu0
    %v1180 = vadd.f32 %v796, %v1179
    %v1181 = vpop.f32.mrb[0].mxu0
    %v1182 = vadd.f32 %v796, %v1181
    %1183 = vmatprep.mubr.bf16.mxu0 0
    %1184 = vmatmul.mubr.bf16.gmra.mrb[0].mxu0 %v619
    %v1185 = vpop.f32.mrb[0].mxu0
    %v1186 = vadd.f32 %v801, %v1185
    %v1187 = vpop.f32.mrb[0].mxu0
    %v1188 = vadd.f32 %v801, %v1187
    %v1189 = vpop.f32.mrb[0].mxu0
    %v1190 = vadd.f32 %v806, %v1189
    %v1191 = vpop.f32.mrb[0].mxu0
    %v1192 = vadd.f32 %v806, %v1191
    %1193 = vmatprep.mubr.bf16.mxu0 0
    %1194 = vmatmul.mubr.bf16.gmra.mrb[0].mxu0 %v620
    %v1195 = vpop.f32.mrb[0].mxu0
    %v1196 = vadd.f32 %v811, %v1195
    %v1197 = vpop.f32.mrb[0].mxu0
    %v1198 = vadd.f32 %v811, %v1197
    %v1199 = vpop.f32.mrb[0].mxu0
    %v1200 = vadd.f32 %v816, %v1199
    %v1201 = vpop.f32.mrb[0].mxu0
    %v1202 = vadd.f32 %v816, %v1201
    %1203 = vmatprep.mubr.bf16.mxu0 0
    %1204 = vmatmul.mubr.bf16.gmra.mrb[0].mxu0 %v621
    %v1205 = vpop.f32.mrb[0].mxu0
    %v1206 = vadd.f32 %v821, %v1205
    %v1207 = vpop.f32.mrb[0].mxu0
    %v1208 = vadd.f32 %v821, %v1207
    %v1209 = vpop.f32.mrb[0].mxu0
    %v1210 = vadd.f32 %v826, %v1209
    %v1211 = vpop.f32.mrb[0].mxu0
    %v1212 = vadd.f32 %v826, %v1211
    %1213 = vmatprep.mubr.bf16.mxu0 0
    %1214 = vmatmul.mubr.bf16.gmra.mrb[0].mxu0 %v622
    %v1215 = vpop.f32.mrb[0].mxu0
    %v1216 = vadd.f32 %v831, %v1215
    %v1217 = vpop.f32.mrb[0].mxu0
    %v1218 = vadd.f32 %v831, %v1217
    %v1219 = vpop.f32.mrb[0].mxu0
    %v1220 = vadd.f32 %v836, %v1219
    %v1221 = vpop.f32.mrb[0].mxu0
    %v1222 = vadd.f32 %v836, %v1221
    %1223 = vmatprep.mubr.bf16.mxu0 0
    %1224 = vmatmul.mubr.bf16.gmra.mrb[0].mxu0 %v623
    %v1225 = vpop.f32.mrb[0].mxu0
    %v1226 = vadd.f32 %v841, %v1225
    %v1227 = vpop.f32.mrb[0].mxu0
    %v1228 = vadd.f32 %v841, %v1227
    %v1229 = vpop.f32.mrb[0].mxu0
    %v1230 = vadd.f32 %v846, %v1229
    %v1231 = vpop.f32.mrb[0].mxu0
    %v1232 = vadd.f32 %v846, %v1231
    %1233 = vdwg.mxu0
    %v1234 = vmax.f32 %v883, 0.0
    %v1235 = vmax.f32 %v885, 0.0
    %v1236 = vmax.f32 %v1076, 0.0
    %v1237 = vmax.f32 %v1078, 0.0
    %v1238 = vmax.f32 %v887, 0.0
    %v1239 = vmax.f32 %v889, 0.0
    %v1240 = vmax.f32 %v1080, 0.0
    %v1241 = vmax.f32 %v1082, 0.0
    %v1242 = vmax.f32 %v893, 0.0
    %v1243 = vmax.f32 %v895, 0.0
    %v1244 = vmax.f32 %v1086, 0.0
    %v1245 = vmax.f32 %v1088, 0.0
    %v1246 = vmax.f32 %v897, 0.0
    %v1247 = vmax.f32 %v899, 0.0
    %v1248 = vmax.f32 %v1090, 0.0
    %v1249 = vmax.f32 %v1092, 0.0
    %v1250 = vmax.f32 %v903, 0.0
    %v1251 = vmax.f32 %v905, 0.0
    %v1252 = vmax.f32 %v1096, 0.0
    %v1253 = vmax.f32 %v1098, 0.0
    %v1254 = vmax.f32 %v907, 0.0
    %v1255 = vmax.f32 %v909, 0.0
    %v1256 = vmax.f32 %v1100, 0.0
    %v1257 = vmax.f32 %v1102, 0.0
    %v1258 = vmax.f32 %v913, 0.0
    %v1259 = vmax.f32 %v915, 0.0
    %v1260 = vmax.f32 %v1106, 0.0
    %v1261 = vmax.f32 %v1108, 0.0
    %v1262 = vmax.f32 %v917, 0.0
    %v1263 = vmax.f32 %v919, 0.0
    %v1264 = vmax.f32 %v1110, 0.0
    %v1265 = vmax.f32 %v1112, 0.0
    %v1266 = vmax.f32 %v923, 0.0
    %v1267 = vmax.f32 %v925, 0.0
    %v1268 = vmax.f32 %v1116, 0.0
    %v1269 = vmax.f32 %v1118, 0.0
    %v1270 = vmax.f32 %v927, 0.0
    %v1271 = vmax.f32 %v929, 0.0
    %v1272 = vmax.f32 %v1120, 0.0
    %v1273 = vmax.f32 %v1122, 0.0
    %v1274 = vmax.f32 %v933, 0.0
    %v1275 = vmax.f32 %v935, 0.0
    %v1276 = vmax.f32 %v1126, 0.0
    %v1277 = vmax.f32 %v1128, 0.0
    %v1278 = vmax.f32 %v937, 0.0
    %v1279 = vmax.f32 %v939, 0.0
    %v1280 = vmax.f32 %v1130, 0.0
    %v1281 = vmax.f32 %v1132, 0.0
    %v1282 = vmax.f32 %v943, 0.0
    %v1283 = vmax.f32 %v945, 0.0
    %v1284 = vmax.f32 %v1136, 0.0
    %v1285 = vmax.f32 %v1138, 0.0
    %v1286 = vmax.f32 %v947, 0.0
    %v1287 = vmax.f32 %v949, 0.0
    %v1288 = vmax.f32 %v1140, 0.0
    %v1289 = vmax.f32 %v1142, 0.0
    %v1290 = vmax.f32 %v953, 0.0
    %v1291 = vmax.f32 %v955, 0.0
    %v1292 = vmax.f32 %v1146, 0.0
    %v1293 = vmax.f32 %v1148, 0.0
    %v1294 = vmax.f32 %v957, 0.0
    %v1295 = vmax.f32 %v959, 0.0
    %v1296 = vmax.f32 %v1150, 0.0
    %v1297 = vmax.f32 %v1152, 0.0
    %v1298 = vmax.f32 %v963, 0.0
    %v1299 = vmax.f32 %v965, 0.0
    %v1300 = vmax.f32 %v1156, 0.0
    %v1301 = vmax.f32 %v1158, 0.0
    %v1302 = vmax.f32 %v967, 0.0
    %v1303 = vmax.f32 %v969, 0.0
    %v1304 = vmax.f32 %v1160, 0.0
    %v1305 = vmax.f32 %v1162, 0.0
    %v1306 = vmax.f32 %v973, 0.0
    %v1307 = vmax.f32 %v975, 0.0
    %v1308 = vmax.f32 %v1166, 0.0
    %v1309 = vmax.f32 %v1168, 0.0
    %v1310 = vmax.f32 %v977, 0.0
    %v1311 = vmax.f32 %v979, 0.0
    %v1312 = vmax.f32 %v1170, 0.0
    %v1313 = vmax.f32 %v1172, 0.0
    %v1314 = vmax.f32 %v983, 0.0
    %v1315 = vmax.f32 %v985, 0.0
    %v1316 = vmax.f32 %v1176, 0.0
    %v1317 = vmax.f32 %v1178, 0.0
    %v1318 = vmax.f32 %v987, 0.0
    %v1319 = vmax.f32 %v989, 0.0
    %v1320 = vmax.f32 %v1180, 0.0
    %v1321 = vmax.f32 %v1182, 0.0
    %v1322 = vmax.f32 %v993, 0.0
    %v1323 = vmax.f32 %v995, 0.0
    %v1324 = vmax.f32 %v1186, 0.0
    %v1325 = vmax.f32 %v1188, 0.0
    %v1326 = vmax.f32 %v997, 0.0
    %v1327 = vmax.f32 %v999, 0.0
    %v1328 = vmax.f32 %v1190, 0.0
    %v1329 = vmax.f32 %v1192, 0.0
    %v1330 = vmax.f32 %v1003, 0.0
    %v1331 = vmax.f32 %v1005, 0.0
    %v1332 = vmax.f32 %v1196, 0.0
    %v1333 = vmax.f32 %v1198, 0.0
    %v1334 = vmax.f32 %v1007, 0.0
    %v1335 = vmax.f32 %v1009, 0.0
    %v1336 = vmax.f32 %v1200, 0.0
    %v1337 = vmax.f32 %v1202, 0.0
    %v1338 = vmax.f32 %v1013, 0.0
    %v1339 = vmax.f32 %v1015, 0.0
    %v1340 = vmax.f32 %v1206, 0.0
    %v1341 = vmax.f32 %v1208, 0.0
    %v1342 = vmax.f32 %v1017, 0.0
    %v1343 = vmax.f32 %v1019, 0.0
    %v1344 = vmax.f32 %v1210, 0.0
    %v1345 = vmax.f32 %v1212, 0.0
    %v1346 = vmax.f32 %v1023, 0.0
    %v1347 = vmax.f32 %v1025, 0.0
    %v1348 = vmax.f32 %v1216, 0.0
    %v1349 = vmax.f32 %v1218, 0.0
    %v1350 = vmax.f32 %v1027, 0.0
    %v1351 = vmax.f32 %v1029, 0.0
    %v1352 = vmax.f32 %v1220, 0.0
    %v1353 = vmax.f32 %v1222, 0.0
    %v1354 = vmax.f32 %v1033, 0.0
    %v1355 = vmax.f32 %v1035, 0.0
    %v1356 = vmax.f32 %v1226, 0.0
    %v1357 = vmax.f32 %v1228, 0.0
    %v1358 = vmax.f32 %v1037, 0.0
    %v1359 = vmax.f32 %v1039, 0.0
    %v1360 = vmax.f32 %v1230, 0.0
    %v1361 = vmax.f32 %v1232, 0.0
    %v1362 = vld [vmem:[#allocation11] sm:$0xff]
    %v1364 = vcombine.high %v1362, %v1362
    %v1366 = vpack.c.bf16 %v1362, %v1362
    %v1367 = vpack.c.bf16 %v1364, %v1364
    %v1368 = vpack.c.bf16 %v1238, %v1234
    %v1369 = vpack.c.bf16 %v1239, %v1235
    %v1370 = vpack.c.bf16 %v1240, %v1236
    %v1371 = vpack.c.bf16 %v1241, %v1237
    %v1372 = vpack.c.bf16 %v1246, %v1242
    %v1373 = vpack.c.bf16 %v1247, %v1243
    %v1374 = vpack.c.bf16 %v1248, %v1244
    %v1375 = vpack.c.bf16 %v1249, %v1245
    %v1376 = vpack.c.bf16 %v1254, %v1250
    %v1377 = vpack.c.bf16 %v1255, %v1251
    %v1378 = vpack.c.bf16 %v1256, %v1252
    %v1379 = vpack.c.bf16 %v1257, %v1253
    %v1380 = vpack.c.bf16 %v1262, %v1258
    %v1381 = vpack.c.bf16 %v1263, %v1259
    %v1382 = vpack.c.bf16 %v1264, %v1260
    %v1383 = vpack.c.bf16 %v1265, %v1261
    %v1384 = vpack.c.bf16 %v1270, %v1266
    %v1385 = vpack.c.bf16 %v1271, %v1267
    %v1386 = vpack.c.bf16 %v1272, %v1268
    %v1387 = vpack.c.bf16 %v1273, %v1269
    %v1388 = vpack.c.bf16 %v1278, %v1274
    %v1389 = vpack.c.bf16 %v1279, %v1275
    %v1390 = vpack.c.bf16 %v1280, %v1276
    %v1391 = vpack.c.bf16 %v1281, %v1277
    %v1392 = vpack.c.bf16 %v1286, %v1282
    %v1393 = vpack.c.bf16 %v1287, %v1283
    %v1394 = vpack.c.bf16 %v1288, %v1284
    %v1395 = vpack.c.bf16 %v1289, %v1285
    %v1396 = vpack.c.bf16 %v1294, %v1290
    %v1397 = vpack.c.bf16 %v1295, %v1291
    %v1398 = vpack.c.bf16 %v1296, %v1292
    %v1399 = vpack.c.bf16 %v1297, %v1293
    %v1400 = vpack.c.bf16 %v1302, %v1298
    %v1401 = vpack.c.bf16 %v1303, %v1299
    %v1402 = vpack.c.bf16 %v1304, %v1300
    %v1403 = vpack.c.bf16 %v1305, %v1301
    %v1404 = vpack.c.bf16 %v1310, %v1306
    %v1405 = vpack.c.bf16 %v1311, %v1307
    %v1406 = vpack.c.bf16 %v1312, %v1308
    %v1407 = vpack.c.bf16 %v1313, %v1309
    %v1408 = vpack.c.bf16 %v1318, %v1314
    %v1409 = vpack.c.bf16 %v1319, %v1315
    %v1410 = vpack.c.bf16 %v1320, %v1316
    %v1411 = vpack.c.bf16 %v1321, %v1317
    %v1412 = vpack.c.bf16 %v1326, %v1322
    %v1413 = vpack.c.bf16 %v1327, %v1323
    %v1414 = vpack.c.bf16 %v1328, %v1324
    %v1415 = vpack.c.bf16 %v1329, %v1325
    %v1416 = vpack.c.bf16 %v1334, %v1330
    %v1417 = vpack.c.bf16 %v1335, %v1331
    %v1418 = vpack.c.bf16 %v1336, %v1332
    %v1419 = vpack.c.bf16 %v1337, %v1333
    %v1420 = vpack.c.bf16 %v1342, %v1338
    %v1421 = vpack.c.bf16 %v1343, %v1339
    %v1422 = vpack.c.bf16 %v1344, %v1340
    %v1423 = vpack.c.bf16 %v1345, %v1341
    %v1424 = vpack.c.bf16 %v1350, %v1346
    %v1425 = vpack.c.bf16 %v1351, %v1347
    %v1426 = vpack.c.bf16 %v1352, %v1348
    %v1427 = vpack.c.bf16 %v1353, %v1349
    %v1428 = vpack.c.bf16 %v1358, %v1354
    %v1429 = vpack.c.bf16 %v1359, %v1355
    %v1430 = vpack.c.bf16 %v1360, %v1356
    %v1431 = vpack.c.bf16 %v1361, %v1357
    %v1432 = vld [vmem:[#allocation13] sm:$0xf]
    %1434 = vset.pattern.permute.xlu0 0
    %1435 = vperm.xlu0 %1434, %v1432
    %v1436 = vpop.permute.xlu0 %1435
    %1438 = vmatprep.subr.bf16.mxu0 %v1369
    %1439 = vmatpush1.bf16.msra.mxu0 %v1368
    %1440 = vmatprep.subr.bf16.mxu0 %v1373
    %1441 = vmatpush1.bf16.msra.mxu0 %v1372
    %1442 = vmatprep.subr.bf16.mxu0 %v1377
    %1443 = vmatpush1.bf16.msra.mxu0 %v1376
    %1444 = vmatprep.subr.bf16.mxu0 %v1381
    %1445 = vmatpush1.bf16.msra.mxu0 %v1380
    %1446 = vmatprep.subr.bf16.mxu0 %v1385
    %1447 = vmatpush1.bf16.msra.mxu0 %v1384
    %1448 = vmatprep.subr.bf16.mxu0 %v1389
    %1449 = vmatpush1.bf16.msra.mxu0 %v1388
    %1450 = vmatprep.subr.bf16.mxu0 %v1393
    %1451 = vmatpush1.bf16.msra.mxu0 %v1392
    %1452 = vmatprep.subr.bf16.mxu0 %v1397
    %1453 = vmatpush1.bf16.msra.mxu0 %v1396
    %1454 = vmatprep.subr.bf16.mxu0 %v1401
    %1455 = vmatpush1.bf16.msra.mxu0 %v1400
    %1456 = vmatprep.subr.bf16.mxu0 %v1405
    %1457 = vmatpush1.bf16.msra.mxu0 %v1404
    %1458 = vmatprep.subr.bf16.mxu0 %v1409
    %1459 = vmatpush1.bf16.msra.mxu0 %v1408
    %1460 = vmatprep.subr.bf16.mxu0 %v1413
    %1461 = vmatpush1.bf16.msra.mxu0 %v1412
    %1462 = vmatprep.subr.bf16.mxu0 %v1417
    %1463 = vmatpush1.bf16.msra.mxu0 %v1416
    %1464 = vmatprep.subr.bf16.mxu0 %v1421
    %1465 = vmatpush1.bf16.msra.mxu0 %v1420
    %1466 = vmatprep.subr.bf16.mxu0 %v1425
    %1467 = vmatpush1.bf16.msra.mxu0 %v1424
    %1468 = vmatprep.subr.bf16.mxu0 %v1429
    %1469 = vmatpush1.bf16.msra.mxu0 %v1428
    %1470 = vmatprep.mubr.bf16.mxu0 %v1367
    %1471 = vmatmul.mubr.bf16.gmra.mrb[0].mxu0 %v1366
    %v1472 = vpop.f32.mrb[0].mxu0
    %v1473 = vadd.f32 %v1436, %v1472
    %v1474 = vpop.f32.mrb[0].mxu0
    %v1475 = vadd.f32 %v1436, %v1474
    %v1476 = vpop.f32.mrb[0].mxu0
    %v1477 = vpop.f32.mrb[0].mxu0
    %1478 = vdwg.mxu0
    %1479 = vmatprep.subr.bf16.mxu0 %v1371
    %1480 = vmatpush1.bf16.msra.mxu0 %v1370
    %1481 = vmatprep.subr.bf16.mxu0 %v1375
    %1482 = vmatpush1.bf16.msra.mxu0 %v1374
    %1483 = vmatprep.subr.bf16.mxu0 %v1379
    %1484 = vmatpush1.bf16.msra.mxu0 %v1378
    %1485 = vmatprep.subr.bf16.mxu0 %v1383
    %1486 = vmatpush1.bf16.msra.mxu0 %v1382
    %1487 = vmatprep.subr.bf16.mxu0 %v1387
    %1488 = vmatpush1.bf16.msra.mxu0 %v1386
    %1489 = vmatprep.subr.bf16.mxu0 %v1391
    %1490 = vmatpush1.bf16.msra.mxu0 %v1390
    %1491 = vmatprep.subr.bf16.mxu0 %v1395
    %1492 = vmatpush1.bf16.msra.mxu0 %v1394
    %1493 = vmatprep.subr.bf16.mxu0 %v1399
    %1494 = vmatpush1.bf16.msra.mxu0 %v1398
    %1495 = vmatprep.subr.bf16.mxu0 %v1403
    %1496 = vmatpush1.bf16.msra.mxu0 %v1402
    %1497 = vmatprep.subr.bf16.mxu0 %v1407
    %1498 = vmatpush1.bf16.msra.mxu0 %v1406
    %1499 = vmatprep.subr.bf16.mxu0 %v1411
    %1500 = vmatpush1.bf16.msra.mxu0 %v1410
    %1501 = vmatprep.subr.bf16.mxu0 %v1415
    %1502 = vmatpush1.bf16.msra.mxu0 %v1414
    %1503 = vmatprep.subr.bf16.mxu0 %v1419
    %1504 = vmatpush1.bf16.msra.mxu0 %v1418
    %1505 = vmatprep.subr.bf16.mxu0 %v1423
    %1506 = vmatpush1.bf16.msra.mxu0 %v1422
    %1507 = vmatprep.subr.bf16.mxu0 %v1427
    %1508 = vmatpush1.bf16.msra.mxu0 %v1426
    %1509 = vmatprep.subr.bf16.mxu0 %v1431
    %1510 = vmatpush1.bf16.msra.mxu0 %v1430
    %1511 = vmatprep.mubr.bf16.mxu0 %v1367
    %1512 = vmatmul.mubr.bf16.gmra.mrb[0].mxu0 %v1366
    %v1513 = vpop.f32.mrb[0].mxu0
    %v1514 = vadd.f32 %v1436, %v1513
    %v1515 = vpop.f32.mrb[0].mxu0
    %v1516 = vadd.f32 %v1436, %v1515
    %v1517 = vpop.f32.mrb[0].mxu0
    %v1518 = vpop.f32.mrb[0].mxu0
    %1519 = vdwg.mxu0
    %v1520 = vxor.u32 %v1473, 2147483648
    %v1521 = vxor.u32 %v1475, 2147483648
    %v1522 = vxor.u32 %v1514, 2147483648
    %v1523 = vxor.u32 %v1516, 2147483648
    %v1524 = vmul.f32 %v1520, 1.442695
    %v1525 = vpow.pop %v1524
    %v1526 = vmul.f32 %v1521, 1.442695
    %v1527 = vpow.pop %v1526
    %v1528 = vmul.f32 %v1522, 1.442695
    %v1529 = vpow.pop %v1528
    %v1530 = vmul.f32 %v1523, 1.442695
    %v1531 = vpow.pop %v1530
    %v1532 = vadd.f32 %v1525, 1.0
    %v1533 = vadd.f32 %v1527, 1.0
    %v1534 = vadd.f32 %v1529, 1.0
    %v1535 = vadd.f32 %v1531, 1.0
    %v1536 = vrcp.pop %v1532
    %v1537 = vmul.f32 1.0, %v1536
    %v1538 = vrcp.pop %v1533
    %v1539 = vmul.f32 1.0, %v1538
    %v1540 = vrcp.pop %v1534
    %v1541 = vmul.f32 1.0, %v1540
    %v1542 = vrcp.pop %v1535
    %v1543 = vmul.f32 1.0, %v1542
    %v1548 = vcombine.low %v1537, %v1539
    %v1549 = vcombine.low %v1541, %v1543
    %1552 = vst [vmem:[#allocation14] sm:$0xff] %v1548
    %1553 = vst [vmem:[#allocation14 + $0x8] sm:$0xff] %v1549
    // Predicated region
    $region58: #{fnn_forward.1} parent=1 // pred_check
      _
    $region59: #{fnn_forward.1} parent=1 // pred_check_branch
      %1555 = sbr.rel (0) target = $region61
    $region60: #{fnn_forward.1} parent=1 // pred_region
      %s1557 = ssub.s32 256, 256
      %1558 = vsyncadd [#allocation4], %s1557
      %s1560 = sshll.u32 [#allocation14], 4
      %s1561 = int_to_ptr.vmem [resolvable:$true] %s1560
      %1563 = dma.vmem_to_hbm [thread:$0]  %s1561, 256, %s7, [#allocation4]
    $region61: #{fnn_forward.1} parent=1 // pred_fallthru
      _
    // Predicated region
    $region62: #{fnn_forward.1} parent=1 // pred_check
      _
    $region63: #{fnn_forward.1} parent=1 // pred_check_branch
      %1565 = sbr.rel (0) target = $region65
    $region64: #{fnn_forward.1} parent=1 // pred_region
      %1566 = dma.done [#allocation4], 256
    $region65: #{fnn_forward.1} parent=1 // pred_fallthru
      _
    %1567 = vsyncpa [#allocation3], 1
    %1568 = vsyncpa [#allocation6], 1
    %1569 = vsyncpa [#allocation9], 1
    %1570 = vsyncpa [#allocation12], 1
    %1571 = vsyncpa [#allocation4], 1

</llo_original>
